<compile_context>
chip_gen: v6e
topology: v6e:2x2x1
jax: 0.10.0
libtpu: 0.0.40
codegen_flags: <defaults>
</compile_context>

<pallas_src>
import functools

import jax
import jax.numpy as jnp
from jax import lax
from jax.experimental import pallas as pl
from jax.experimental.pallas import tpu as pltpu


def _round_up(x, m):
    return (x + m - 1) // m * m


# ----------------------------------------------------------------------------
# Phase 1: LSTM recurrence (input projection hoisted out of the time loop).
# ----------------------------------------------------------------------------
def _lstm_kernel(x_ref, wih_ref, whh_ref, b_ref, hs_ref, xw_ref,
                 *, T, B, H, unroll):
    """x_ref: (T*B, E); wih: (E, 4H); whh: (H, 4H); b: (1, 4H) f32;
    hs_ref (out): (T*B, H) compute_dtype; xw_ref (scratch): (T*B, 4H)."""
    # Hoisted input projection: one MXU matmul with M = T*B, bias added once.
    # Stored in compute_dtype (bf16 by default) to halve the VMEM footprint.
    xw_ref[...] = (
        jnp.dot(x_ref[...], wih_ref[...], preferred_element_type=jnp.float32)
        + b_ref[...]).astype(xw_ref.dtype)

    h0 = jnp.zeros((B, H), jnp.float32)
    c0 = jnp.zeros((B, H), jnp.float32)

    def step(t, carry):
        h, c = carry                                   # vreg-carried f32 state
        row = pl.multiple_of(t * B, B)
        # bf16 x bf16 -> f32 accumulation on the serial critical path.
        gates = (xw_ref[pl.ds(row, B), :].astype(jnp.float32)
                 + jnp.dot(h.astype(whh_ref.dtype), whh_ref[...],
                           preferred_element_type=jnp.float32))   # (B, 4H) f32

        i_g = jax.nn.sigmoid(gates[:, 0 * H:1 * H])
        f_g = jax.nn.sigmoid(gates[:, 1 * H:2 * H])
        g_g = jnp.tanh(gates[:, 2 * H:3 * H])
        o_g = jax.nn.sigmoid(gates[:, 3 * H:4 * H])

        c_new = f_g * c + i_g * g_g
        h_new = o_g * jnp.tanh(c_new)

        hs_ref[pl.ds(row, B), :] = h_new.astype(hs_ref.dtype)
        return (h_new, c_new)

    # Full unroll only when live vregs stay comfortably under the 64-vreg file.
    lax.fori_loop(0, T, step, (h0, c0), unroll=unroll)


def _run_lstm(x2d, w_ih_t, w_hh_t, b, *, T, B, H, dtype):
    unroll = True if (T <= 8 and H <= 256) else 2
    vmem = pl.BlockSpec(memory_space=pltpu.MemorySpace.VMEM)
    return pl.pallas_call(
        functools.partial(_lstm_kernel, T=T, B=B, H=H, unroll=unroll),
        out_shape=jax.ShapeDtypeStruct((T * B, H), dtype),
        in_specs=[vmem, vmem, vmem, vmem],
        out_specs=vmem,
        scratch_shapes=[pltpu.VMEM((T * B, 4 * H), dtype)],
        compiler_params=pltpu.CompilerParams(
            vmem_limit_bytes=32 * 1024 * 1024),
    )(x2d, w_ih_t, w_hh_t, b)


# ----------------------------------------------------------------------------
# Phase 2: fc as one large matmul, tiled over the vocab axis (parallel grid).
# ----------------------------------------------------------------------------
def _fc_kernel(h_ref, w_ref, b_ref, o_ref):
    o_ref[...] = (
        jnp.dot(h_ref[...], w_ref[...], preferred_element_type=jnp.float32)
        + b_ref[...]).astype(o_ref.dtype)


def _pick_v_tile(Vp, M, Hp, w_bytes, out_bytes):
    """Largest Vt (multiple of 128, divisor of Vp) whose double-buffered
    weight-stream + output blocks fit a ~24 MB budget; prefer >= 2 tiles so
    the parallel vocab axis can split across v7x's 2 TensorCores."""
    budget = 24 * 1024 * 1024
    tile = 128
    for cand in (2048, 1536, 1024, 768, 512, 384, 256, 128):
        if Vp % cand:
            continue
        need = 2 * Hp * cand * w_bytes + 2 * M * cand * out_bytes
        if need <= budget:
            tile = cand
            break
    while tile > 128 and Vp // tile < 2 and Vp % (tile // 2) == 0:
        tile //= 2
    return tile


def _run_fc(hs, w_fc_t, b_fc, *, M, H, V, v_tile, out_dtype):
    return pl.pallas_call(
        _fc_kernel,
        out_shape=jax.ShapeDtypeStruct((M, V), out_dtype),
        grid=(V // v_tile,),
        in_specs=[
            # Constant-index hidden slab: block index never changes, so the
            # pipeline does not re-DMA it per grid step.
            pl.BlockSpec((M, H), lambda j: (0, 0)),
            pl.BlockSpec((H, v_tile), lambda j: (0, j)),   # w_fc streamed over V
            pl.BlockSpec((1, v_tile), lambda j: (0, j)),   # bias tile
        ],
        out_specs=pl.BlockSpec((M, v_tile), lambda j: (0, j)),
        compiler_params=pltpu.CompilerParams(
            dimension_semantics=("parallel",),
            # <= 48 MB: safe on v7x (64 MiB physical), ample headroom elsewhere.
            vmem_limit_bytes=48 * 1024 * 1024),
    )(hs, w_fc_t, b_fc)


# ----------------------------------------------------------------------------
# Wrapper mirroring DecoderRNN.forward(features, captions)
# ----------------------------------------------------------------------------
def decoder_forward(params, features, captions, *,
                    compute_dtype=jnp.bfloat16, logits_dtype=jnp.float32,
                    v_tile=None):
    """features: (B, E) f32, captions: (B, T) int32 -> logits (B, T, V)."""
    B, T = captions.shape
    H = params["w_hh"].shape[1]
    V = params["w_fc"].shape[0]

    Bp = _round_up(B, 8)                 # f32 sublane granularity (LSTM phase)
    Hp = _round_up(H, 128)               # lane granularity -> dense gate slices
    Vp = _round_up(V, 128)
    M = B * T                            # fc rows; padded rows dropped before fc

    w_bytes = jnp.dtype(compute_dtype).itemsize
    out_bytes = jnp.dtype(logits_dtype).itemsize
    Vt = v_tile if v_tile is not None else _pick_v_tile(Vp, M, Hp, w_bytes,
                                                        out_bytes)

    # Embedding + concat (glue; gather is not the hot path). Only the first T
    # LSTM inputs influence fc(out[:, :-1, :]), so the last token is dropped.
    emb = params["emb"][captions[:, :T - 1]]                   # (B, T-1, E)
    x = jnp.concatenate([features[:, None, :], emb], axis=1)   # (B, T, E)
    x = jnp.pad(x, ((0, Bp - B), (0, 0), (0, 0)))
    x2d = (jnp.transpose(x, (1, 0, 2))                         # (T, Bp, E)
           .reshape(T * Bp, x.shape[-1]).astype(compute_dtype))

    # Weight prep: pad each gate block H -> Hp with zeros (padded lanes of h/c
    # provably stay exactly 0, so this is semantics-preserving).
    def pad_gate_rows(w):                                      # (4H, K)->(4Hp, K)
        w4 = w.reshape(4, H, w.shape[1])
        return jnp.pad(w4, ((0, 0), (0, Hp - H), (0, 0))).reshape(4 * Hp, -1)

    w_ih_t = pad_gate_rows(params["w_ih"]).T.astype(compute_dtype)    # (E, 4Hp)
    w_hh_p = jnp.pad(pad_gate_rows(params["w_hh"]), ((0, 0), (0, Hp - H)))
    w_hh_t = w_hh_p.T.astype(compute_dtype)                           # (Hp, 4Hp)
    b4 = (params["b_ih"] + params["b_hh"]).reshape(4, H)
    b = jnp.pad(b4, ((0, 0), (0, Hp - H))).reshape(1, 4 * Hp).astype(jnp.float32)

    w_fc_t = jnp.pad(params["w_fc"],
                     ((0, Vp - V), (0, Hp - H))).T.astype(compute_dtype)  # (Hp, Vp)
    b_fc = jnp.pad(params["b_fc"], (0, Vp - V))[None, :].astype(jnp.float32)

    # Phase 1: recurrence (time-major hidden slab, compute_dtype).
    hs = _run_lstm(x2d, w_ih_t, w_hh_t, b, T=T, B=Bp, H=Hp,
                   dtype=compute_dtype)                        # (T*Bp, Hp)

    # Drop padded batch rows from the *tiny* hidden slab (not the big logits)
    # and go batch-major so the fc kernel writes logits in (B, T, V) row order.
    hs_bt = (hs.reshape(T, Bp, Hp)[:, :B, :]
             .transpose(1, 0, 2).reshape(M, Hp))

    # Phase 2: fc, V-tiled parallel grid, logits written directly in row order.
    logits = _run_fc(hs_bt, w_fc_t, b_fc, M=M, H=Hp, V=Vp, v_tile=Vt,
                     out_dtype=logits_dtype)
    logits = logits.reshape(B, T, Vp)
    if Vp != V:  # pure reshape (no copy) whenever V is a multiple of 128
        logits = logits[:, :, :V]
    return logits


# ----------------------------------------------------------------------------
# Pure-JAX reference (correctness check).
# ----------------------------------------------------------------------------
def decoder_forward_ref(params, features, captions):
    emb = params["emb"][captions]
    x = jnp.concatenate([features[:, None, :], emb], axis=1)   # (B, T+1, E)
    H = params["w_hh"].shape[1]
    B = x.shape[0]

    def step(carry, x_t):
        h, c = carry
        gates = (x_t @ params["w_ih"].T + h @ params["w_hh"].T
                 + params["b_ih"] + params["b_hh"])
        i_g = jax.nn.sigmoid(gates[:, 0 * H:1 * H])
        f_g = jax.nn.sigmoid(gates[:, 1 * H:2 * H])
        g_g = jnp.tanh(gates[:, 2 * H:3 * H])
        o_g = jax.nn.sigmoid(gates[:, 3 * H:4 * H])
        c_new = f_g * c + i_g * g_g
        h_new = o_g * jnp.tanh(c_new)
        return (h_new, c_new), h_new

    h0 = jnp.zeros((B, H), jnp.float32)
    c0 = jnp.zeros((B, H), jnp.float32)
    _, hs = lax.scan(step, (h0, c0), jnp.transpose(x, (1, 0, 2)))
    out = jnp.transpose(hs, (1, 0, 2))[:, :-1, :]              # (B, T, H)
    return out @ params["w_fc"].T + params["b_fc"]


# ----------------------------------------------------------------------------
# Deterministic parameter init (shapes per DecoderRNN.__init__).
# ----------------------------------------------------------------------------
def init_params(key, embed_size, hidden_size, vocab_size):
    ks = jax.random.split(key, 7)
    s = 0.1
    return {
        "emb":  jax.random.normal(ks[0], (vocab_size, embed_size), jnp.float32) * s,
        "w_ih": jax.random.normal(ks[1], (4 * hidden_size, embed_size), jnp.float32) * s,
        "w_hh": jax.random.normal(ks[2], (4 * hidden_size, hidden_size), jnp.float32) * s,
        "b_ih": jax.random.normal(ks[3], (4 * hidden_size,), jnp.float32) * s,
        "b_hh": jax.random.normal(ks[4], (4 * hidden_size,), jnp.float32) * s,
        "w_fc": jax.random.normal(ks[5], (vocab_size, hidden_size), jnp.float32) * s,
        "b_fc": jax.random.normal(ks[6], (vocab_size,), jnp.float32) * s,
    }


# TODO(synk): beam_search / sample are host-side Python greedy/beam decoding
# loops (data-dependent control flow + .item() calls); not part of forward()
# and not translated to Pallas kernels.

if __name__ == "__main__":
    B, T = 2, 7
    embed_size, hidden_size, vocab_size = 32, 32, 128

    key = jax.random.PRNGKey(0)
    k_params, k_feat, k_cap = jax.random.split(key, 3)

    params = init_params(k_params, embed_size, hidden_size, vocab_size)
    features = jax.random.normal(k_feat, (B, embed_size), jnp.float32)
    captions = jax.random.randint(k_cap, (B, T), 0, vocab_size, jnp.int32)

    ref = decoder_forward_ref(params, features, captions)

    # f32 path: tight check.
    out = decoder_forward(params, features, captions,
                          compute_dtype=jnp.float32)
    out = jax.block_until_ready(out)
    assert out.shape == (B, T, vocab_size), out.shape
    assert jnp.allclose(out, ref, atol=2e-3, rtol=2e-3), \
        float(jnp.max(jnp.abs(out - ref)))

    # Default bf16 path (f32 accumulation + f32 gate math): loose check.
    out_bf16 = decoder_forward(params, features, captions)
    out_bf16 = jax.block_until_ready(out_bf16)
    assert out_bf16.shape == (B, T, vocab_size), out_bf16.shape
    assert jnp.allclose(out_bf16, ref, atol=5e-2, rtol=5e-2), \
        float(jnp.max(jnp.abs(out_bf16 - ref)))

    print("KERNEL_OK")
</pallas_src>

<mosaic_0001>
module attributes {stable_mosaic.version = 11 : i64} {
  func.func @_lstm_kernel(%arg0: memref<56x32xf32, #tpu.memory_space<vmem>>, %arg1: memref<32x512xf32, #tpu.memory_space<vmem>>, %arg2: memref<128x512xf32, #tpu.memory_space<vmem>>, %arg3: memref<1x512xf32, #tpu.memory_space<vmem>>, %arg4: memref<56x128xf32, #tpu.memory_space<vmem>>, %arg5: memref<56x512xf32, #tpu.memory_space<vmem>>) attributes {dimension_semantics = [], scalar_prefetch = 0 : i64, scratch_operands = 1 : i64, tpu.core_type = #tpu.core_type<tc>} {
    %c0 = arith.constant 0 : index
    %c0_0 = arith.constant 0 : index
    %0 = vector.load %arg0[%c0, %c0_0] : memref<56x32xf32, #tpu.memory_space<vmem>>, vector<56x32xf32>
    %c0_1 = arith.constant 0 : index
    %c0_2 = arith.constant 0 : index
    %1 = vector.load %arg1[%c0_1, %c0_2] : memref<32x512xf32, #tpu.memory_space<vmem>>, vector<32x512xf32>
    %cst = arith.constant dense<0.000000e+00> : vector<56x512xf32>
    %2 = tpu.matmul %0, %1, %cst {dimension_numbers = #tpu.dot_dimension_numbers<[1], [0], [0], [1], [0, 0, 1, 1], [], []>} : vector<56x32xf32>, vector<32x512xf32>, vector<56x512xf32> -> vector<56x512xf32>
    %c0_3 = arith.constant 0 : index
    %c0_4 = arith.constant 0 : index
    %3 = vector.load %arg3[%c0_3, %c0_4] : memref<1x512xf32, #tpu.memory_space<vmem>>, vector<1x512xf32>
    %4 = vector.broadcast %3 : vector<1x512xf32> to vector<56x512xf32>
    %5 = arith.addf %2, %4 : vector<56x512xf32>
    %c0_5 = arith.constant 0 : index
    %c0_6 = arith.constant 0 : index
    %6 = vector.load %arg5[%c0_5, %c0_6] : memref<56x512xf32, #tpu.memory_space<vmem>>, vector<56x512xf32>
    tpu.vector_store %arg5[%c0_5, %c0_6], %5 {strides = array<i32>} : memref<56x512xf32, #tpu.memory_space<vmem>>, vector<56x512xf32>,
    %cst_7 = arith.constant 0.000000e+00 : f32
    %7 = vector.broadcast %cst_7 : f32 to vector<8x128xf32>
    %cst_8 = arith.constant 0.000000e+00 : f32
    %8 = vector.broadcast %cst_8 : f32 to vector<8x128xf32>
    %c0_i32 = arith.constant 0 : i32
    %c8_i32 = arith.constant 8 : i32
    %9 = arith.muli %c0_i32, %c8_i32 : i32
    %10 = tpu.assume_multiple %9, 8 : i32
    %11 = arith.index_cast %10 : i32 to index
    %c0_9 = arith.constant 0 : index
    %12 = vector.load %arg5[%11, %c0_9] : memref<56x512xf32, #tpu.memory_space<vmem>>, vector<8x512xf32>
    %c0_10 = arith.constant 0 : index
    %c0_11 = arith.constant 0 : index
    %13 = vector.load %arg2[%c0_10, %c0_11] : memref<128x512xf32, #tpu.memory_space<vmem>>, vector<128x512xf32>
    %cst_12 = arith.constant dense<0.000000e+00> : vector<8x512xf32>
    %14 = tpu.matmul %7, %13, %cst_12 {dimension_numbers = #tpu.dot_dimension_numbers<[1], [0], [0], [1], [0, 0, 1, 1], [], []>} : vector<8x128xf32>, vector<128x512xf32>, vector<8x512xf32> -> vector<8x512xf32>
    %15 = arith.addf %12, %14 : vector<8x512xf32>
    %16 = vector.extract_strided_slice %15 {offsets = [0, 0], sizes = [8, 128], strides = [1, 1]} : vector<8x512xf32> to vector<8x128xf32>
    %17 = arith.negf %16 : vector<8x128xf32>
    %18 = math.exp %17 : vector<8x128xf32>
    %cst_13 = arith.constant 1.000000e+00 : f32
    %19 = vector.broadcast %cst_13 : f32 to vector<8x128xf32>
    %20 = arith.addf %19, %18 : vector<8x128xf32>
    %21 = arith.divf %19, %20 : vector<8x128xf32>
    %22 = vector.extract_strided_slice %15 {offsets = [0, 128], sizes = [8, 128], strides = [1, 1]} : vector<8x512xf32> to vector<8x128xf32>
    %23 = arith.negf %22 : vector<8x128xf32>
    %24 = math.exp %23 : vector<8x128xf32>
    %cst_14 = arith.constant 1.000000e+00 : f32
    %25 = vector.broadcast %cst_14 : f32 to vector<8x128xf32>
    %26 = arith.addf %25, %24 : vector<8x128xf32>
    %27 = arith.divf %25, %26 : vector<8x128xf32>
    %28 = vector.extract_strided_slice %15 {offsets = [0, 256], sizes = [8, 128], strides = [1, 1]} : vector<8x512xf32> to vector<8x128xf32>
    %29 = math.tanh %28 : vector<8x128xf32>
    %30 = vector.extract_strided_slice %15 {offsets = [0, 384], sizes = [8, 128], strides = [1, 1]} : vector<8x512xf32> to vector<8x128xf32>
    %31 = arith.negf %30 : vector<8x128xf32>
    %32 = math.exp %31 : vector<8x128xf32>
    %cst_15 = arith.constant 1.000000e+00 : f32
    %33 = vector.broadcast %cst_15 : f32 to vector<8x128xf32>
    %34 = arith.addf %33, %32 : vector<8x128xf32>
    %35 = arith.divf %33, %34 : vector<8x128xf32>
    %36 = arith.mulf %27, %8 : vector<8x128xf32>
    %37 = arith.mulf %21, %29 : vector<8x128xf32>
    %38 = arith.addf %36, %37 : vector<8x128xf32>
    %39 = math.tanh %38 : vector<8x128xf32>
    %40 = arith.mulf %35, %39 : vector<8x128xf32>
    %41 = arith.index_cast %10 : i32 to index
    %c0_16 = arith.constant 0 : index
    %42 = vector.load %arg4[%41, %c0_16] : memref<56x128xf32, #tpu.memory_space<vmem>>, vector<8x128xf32>
    tpu.vector_store %arg4[%41, %c0_16], %40 {strides = array<i32>} : memref<56x128xf32, #tpu.memory_space<vmem>>, vector<8x128xf32>,
    %c1_i32 = arith.constant 1 : i32
    %c8_i32_17 = arith.constant 8 : i32
    %43 = arith.muli %c1_i32, %c8_i32_17 : i32
    %44 = tpu.assume_multiple %43, 8 : i32
    %45 = arith.index_cast %44 : i32 to index
    %c0_18 = arith.constant 0 : index
    %46 = vector.load %arg5[%45, %c0_18] : memref<56x512xf32, #tpu.memory_space<vmem>>, vector<8x512xf32>
    %c0_19 = arith.constant 0 : index
    %c0_20 = arith.constant 0 : index
    %47 = vector.load %arg2[%c0_19, %c0_20] : memref<128x512xf32, #tpu.memory_space<vmem>>, vector<128x512xf32>
    %cst_21 = arith.constant dense<0.000000e+00> : vector<8x512xf32>
    %48 = tpu.matmul %40, %47, %cst_21 {dimension_numbers = #tpu.dot_dimension_numbers<[1], [0], [0], [1], [0, 0, 1, 1], [], []>} : vector<8x128xf32>, vector<128x512xf32>, vector<8x512xf32> -> vector<8x512xf32>
    %49 = arith.addf %46, %48 : vector<8x512xf32>
    %50 = vector.extract_strided_slice %49 {offsets = [0, 0], sizes = [8, 128], strides = [1, 1]} : vector<8x512xf32> to vector<8x128xf32>
    %51 = arith.negf %50 : vector<8x128xf32>
    %52 = math.exp %51 : vector<8x128xf32>
    %cst_22 = arith.constant 1.000000e+00 : f32
    %53 = vector.broadcast %cst_22 : f32 to vector<8x128xf32>
    %54 = arith.addf %53, %52 : vector<8x128xf32>
    %55 = arith.divf %53, %54 : vector<8x128xf32>
    %56 = vector.extract_strided_slice %49 {offsets = [0, 128], sizes = [8, 128], strides = [1, 1]} : vector<8x512xf32> to vector<8x128xf32>
    %57 = arith.negf %56 : vector<8x128xf32>
    %58 = math.exp %57 : vector<8x128xf32>
    %cst_23 = arith.constant 1.000000e+00 : f32
    %59 = vector.broadcast %cst_23 : f32 to vector<8x128xf32>
    %60 = arith.addf %59, %58 : vector<8x128xf32>
    %61 = arith.divf %59, %60 : vector<8x128xf32>
    %62 = vector.extract_strided_slice %49 {offsets = [0, 256], sizes = [8, 128], strides = [1, 1]} : vector<8x512xf32> to vector<8x128xf32>
    %63 = math.tanh %62 : vector<8x128xf32>
    %64 = vector.extract_strided_slice %49 {offsets = [0, 384], sizes = [8, 128], strides = [1, 1]} : vector<8x512xf32> to vector<8x128xf32>
    %65 = arith.negf %64 : vector<8x128xf32>
    %66 = math.exp %65 : vector<8x128xf32>
    %cst_24 = arith.constant 1.000000e+00 : f32
    %67 = vector.broadcast %cst_24 : f32 to vector<8x128xf32>
    %68 = arith.addf %67, %66 : vector<8x128xf32>
    %69 = arith.divf %67, %68 : vector<8x128xf32>
    %70 = arith.mulf %61, %38 : vector<8x128xf32>
    %71 = arith.mulf %55, %63 : vector<8x128xf32>
    %72 = arith.addf %70, %71 : vector<8x128xf32>
    %73 = math.tanh %72 : vector<8x128xf32>
    %74 = arith.mulf %69, %73 : vector<8x128xf32>
    %75 = arith.index_cast %44 : i32 to index
    %c0_25 = arith.constant 0 : index
    %76 = vector.load %arg4[%75, %c0_25] : memref<56x128xf32, #tpu.memory_space<vmem>>, vector<8x128xf32>
    tpu.vector_store %arg4[%75, %c0_25], %74 {strides = array<i32>} : memref<56x128xf32, #tpu.memory_space<vmem>>, vector<8x128xf32>,
    %c2_i32 = arith.constant 2 : i32
    %c8_i32_26 = arith.constant 8 : i32
    %77 = arith.muli %c2_i32, %c8_i32_26 : i32
    %78 = tpu.assume_multiple %77, 8 : i32
    %79 = arith.index_cast %78 : i32 to index
    %c0_27 = arith.constant 0 : index
    %80 = vector.load %arg5[%79, %c0_27] : memref<56x512xf32, #tpu.memory_space<vmem>>, vector<8x512xf32>
    %c0_28 = arith.constant 0 : index
    %c0_29 = arith.constant 0 : index
    %81 = vector.load %arg2[%c0_28, %c0_29] : memref<128x512xf32, #tpu.memory_space<vmem>>, vector<128x512xf32>
    %cst_30 = arith.constant dense<0.000000e+00> : vector<8x512xf32>
    %82 = tpu.matmul %74, %81, %cst_30 {dimension_numbers = #tpu.dot_dimension_numbers<[1], [0], [0], [1], [0, 0, 1, 1], [], []>} : vector<8x128xf32>, vector<128x512xf32>, vector<8x512xf32> -> vector<8x512xf32>
    %83 = arith.addf %80, %82 : vector<8x512xf32>
    %84 = vector.extract_strided_slice %83 {offsets = [0, 0], sizes = [8, 128], strides = [1, 1]} : vector<8x512xf32> to vector<8x128xf32>
    %85 = arith.negf %84 : vector<8x128xf32>
    %86 = math.exp %85 : vector<8x128xf32>
    %cst_31 = arith.constant 1.000000e+00 : f32
    %87 = vector.broadcast %cst_31 : f32 to vector<8x128xf32>
    %88 = arith.addf %87, %86 : vector<8x128xf32>
    %89 = arith.divf %87, %88 : vector<8x128xf32>
    %90 = vector.extract_strided_slice %83 {offsets = [0, 128], sizes = [8, 128], strides = [1, 1]} : vector<8x512xf32> to vector<8x128xf32>
    %91 = arith.negf %90 : vector<8x128xf32>
    %92 = math.exp %91 : vector<8x128xf32>
    %cst_32 = arith.constant 1.000000e+00 : f32
    %93 = vector.broadcast %cst_32 : f32 to vector<8x128xf32>
    %94 = arith.addf %93, %92 : vector<8x128xf32>
    %95 = arith.divf %93, %94 : vector<8x128xf32>
    %96 = vector.extract_strided_slice %83 {offsets = [0, 256], sizes = [8, 128], strides = [1, 1]} : vector<8x512xf32> to vector<8x128xf32>
    %97 = math.tanh %96 : vector<8x128xf32>
    %98 = vector.extract_strided_slice %83 {offsets = [0, 384], sizes = [8, 128], strides = [1, 1]} : vector<8x512xf32> to vector<8x128xf32>
    %99 = arith.negf %98 : vector<8x128xf32>
    %100 = math.exp %99 : vector<8x128xf32>
    %cst_33 = arith.constant 1.000000e+00 : f32
    %101 = vector.broadcast %cst_33 : f32 to vector<8x128xf32>
    %102 = arith.addf %101, %100 : vector<8x128xf32>
    %103 = arith.divf %101, %102 : vector<8x128xf32>
    %104 = arith.mulf %95, %72 : vector<8x128xf32>
    %105 = arith.mulf %89, %97 : vector<8x128xf32>
    %106 = arith.addf %104, %105 : vector<8x128xf32>
    %107 = math.tanh %106 : vector<8x128xf32>
    %108 = arith.mulf %103, %107 : vector<8x128xf32>
    %109 = arith.index_cast %78 : i32 to index
    %c0_34 = arith.constant 0 : index
    %110 = vector.load %arg4[%109, %c0_34] : memref<56x128xf32, #tpu.memory_space<vmem>>, vector<8x128xf32>
    tpu.vector_store %arg4[%109, %c0_34], %108 {strides = array<i32>} : memref<56x128xf32, #tpu.memory_space<vmem>>, vector<8x128xf32>,
    %c3_i32 = arith.constant 3 : i32
    %c8_i32_35 = arith.constant 8 : i32
    %111 = arith.muli %c3_i32, %c8_i32_35 : i32
    %112 = tpu.assume_multiple %111, 8 : i32
    %113 = arith.index_cast %112 : i32 to index
    %c0_36 = arith.constant 0 : index
    %114 = vector.load %arg5[%113, %c0_36] : memref<56x512xf32, #tpu.memory_space<vmem>>, vector<8x512xf32>
    %c0_37 = arith.constant 0 : index
    %c0_38 = arith.constant 0 : index
    %115 = vector.load %arg2[%c0_37, %c0_38] : memref<128x512xf32, #tpu.memory_space<vmem>>, vector<128x512xf32>
    %cst_39 = arith.constant dense<0.000000e+00> : vector<8x512xf32>
    %116 = tpu.matmul %108, %115, %cst_39 {dimension_numbers = #tpu.dot_dimension_numbers<[1], [0], [0], [1], [0, 0, 1, 1], [], []>} : vector<8x128xf32>, vector<128x512xf32>, vector<8x512xf32> -> vector<8x512xf32>
    %117 = arith.addf %114, %116 : vector<8x512xf32>
    %118 = vector.extract_strided_slice %117 {offsets = [0, 0], sizes = [8, 128], strides = [1, 1]} : vector<8x512xf32> to vector<8x128xf32>
    %119 = arith.negf %118 : vector<8x128xf32>
    %120 = math.exp %119 : vector<8x128xf32>
    %cst_40 = arith.constant 1.000000e+00 : f32
    %121 = vector.broadcast %cst_40 : f32 to vector<8x128xf32>
    %122 = arith.addf %121, %120 : vector<8x128xf32>
    %123 = arith.divf %121, %122 : vector<8x128xf32>
    %124 = vector.extract_strided_slice %117 {offsets = [0, 128], sizes = [8, 128], strides = [1, 1]} : vector<8x512xf32> to vector<8x128xf32>
    %125 = arith.negf %124 : vector<8x128xf32>
    %126 = math.exp %125 : vector<8x128xf32>
    %cst_41 = arith.constant 1.000000e+00 : f32
    %127 = vector.broadcast %cst_41 : f32 to vector<8x128xf32>
    %128 = arith.addf %127, %126 : vector<8x128xf32>
    %129 = arith.divf %127, %128 : vector<8x128xf32>
    %130 = vector.extract_strided_slice %117 {offsets = [0, 256], sizes = [8, 128], strides = [1, 1]} : vector<8x512xf32> to vector<8x128xf32>
    %131 = math.tanh %130 : vector<8x128xf32>
    %132 = vector.extract_strided_slice %117 {offsets = [0, 384], sizes = [8, 128], strides = [1, 1]} : vector<8x512xf32> to vector<8x128xf32>
    %133 = arith.negf %132 : vector<8x128xf32>
    %134 = math.exp %133 : vector<8x128xf32>
    %cst_42 = arith.constant 1.000000e+00 : f32
    %135 = vector.broadcast %cst_42 : f32 to vector<8x128xf32>
    %136 = arith.addf %135, %134 : vector<8x128xf32>
    %137 = arith.divf %135, %136 : vector<8x128xf32>
    %138 = arith.mulf %129, %106 : vector<8x128xf32>
    %139 = arith.mulf %123, %131 : vector<8x128xf32>
    %140 = arith.addf %138, %139 : vector<8x128xf32>
    %141 = math.tanh %140 : vector<8x128xf32>
    %142 = arith.mulf %137, %141 : vector<8x128xf32>
    %143 = arith.index_cast %112 : i32 to index
    %c0_43 = arith.constant 0 : index
    %144 = vector.load %arg4[%143, %c0_43] : memref<56x128xf32, #tpu.memory_space<vmem>>, vector<8x128xf32>
    tpu.vector_store %arg4[%143, %c0_43], %142 {strides = array<i32>} : memref<56x128xf32, #tpu.memory_space<vmem>>, vector<8x128xf32>,
    %c4_i32 = arith.constant 4 : i32
    %c8_i32_44 = arith.constant 8 : i32
    %145 = arith.muli %c4_i32, %c8_i32_44 : i32
    %146 = tpu.assume_multiple %145, 8 : i32
    %147 = arith.index_cast %146 : i32 to index
    %c0_45 = arith.constant 0 : index
    %148 = vector.load %arg5[%147, %c0_45] : memref<56x512xf32, #tpu.memory_space<vmem>>, vector<8x512xf32>
    %c0_46 = arith.constant 0 : index
    %c0_47 = arith.constant 0 : index
    %149 = vector.load %arg2[%c0_46, %c0_47] : memref<128x512xf32, #tpu.memory_space<vmem>>, vector<128x512xf32>
    %cst_48 = arith.constant dense<0.000000e+00> : vector<8x512xf32>
    %150 = tpu.matmul %142, %149, %cst_48 {dimension_numbers = #tpu.dot_dimension_numbers<[1], [0], [0], [1], [0, 0, 1, 1], [], []>} : vector<8x128xf32>, vector<128x512xf32>, vector<8x512xf32> -> vector<8x512xf32>
    %151 = arith.addf %148, %150 : vector<8x512xf32>
    %152 = vector.extract_strided_slice %151 {offsets = [0, 0], sizes = [8, 128], strides = [1, 1]} : vector<8x512xf32> to vector<8x128xf32>
    %153 = arith.negf %152 : vector<8x128xf32>
    %154 = math.exp %153 : vector<8x128xf32>
    %cst_49 = arith.constant 1.000000e+00 : f32
    %155 = vector.broadcast %cst_49 : f32 to vector<8x128xf32>
    %156 = arith.addf %155, %154 : vector<8x128xf32>
    %157 = arith.divf %155, %156 : vector<8x128xf32>
    %158 = vector.extract_strided_slice %151 {offsets = [0, 128], sizes = [8, 128], strides = [1, 1]} : vector<8x512xf32> to vector<8x128xf32>
    %159 = arith.negf %158 : vector<8x128xf32>
    %160 = math.exp %159 : vector<8x128xf32>
    %cst_50 = arith.constant 1.000000e+00 : f32
    %161 = vector.broadcast %cst_50 : f32 to vector<8x128xf32>
    %162 = arith.addf %161, %160 : vector<8x128xf32>
    %163 = arith.divf %161, %162 : vector<8x128xf32>
    %164 = vector.extract_strided_slice %151 {offsets = [0, 256], sizes = [8, 128], strides = [1, 1]} : vector<8x512xf32> to vector<8x128xf32>
    %165 = math.tanh %164 : vector<8x128xf32>
    %166 = vector.extract_strided_slice %151 {offsets = [0, 384], sizes = [8, 128], strides = [1, 1]} : vector<8x512xf32> to vector<8x128xf32>
    %167 = arith.negf %166 : vector<8x128xf32>
    %168 = math.exp %167 : vector<8x128xf32>
    %cst_51 = arith.constant 1.000000e+00 : f32
    %169 = vector.broadcast %cst_51 : f32 to vector<8x128xf32>
    %170 = arith.addf %169, %168 : vector<8x128xf32>
    %171 = arith.divf %169, %170 : vector<8x128xf32>
    %172 = arith.mulf %163, %140 : vector<8x128xf32>
    %173 = arith.mulf %157, %165 : vector<8x128xf32>
    %174 = arith.addf %172, %173 : vector<8x128xf32>
    %175 = math.tanh %174 : vector<8x128xf32>
    %176 = arith.mulf %171, %175 : vector<8x128xf32>
    %177 = arith.index_cast %146 : i32 to index
    %c0_52 = arith.constant 0 : index
    %178 = vector.load %arg4[%177, %c0_52] : memref<56x128xf32, #tpu.memory_space<vmem>>, vector<8x128xf32>
    tpu.vector_store %arg4[%177, %c0_52], %176 {strides = array<i32>} : memref<56x128xf32, #tpu.memory_space<vmem>>, vector<8x128xf32>,
    %c5_i32 = arith.constant 5 : i32
    %c8_i32_53 = arith.constant 8 : i32
    %179 = arith.muli %c5_i32, %c8_i32_53 : i32
    %180 = tpu.assume_multiple %179, 8 : i32
    %181 = arith.index_cast %180 : i32 to index
    %c0_54 = arith.constant 0 : index
    %182 = vector.load %arg5[%181, %c0_54] : memref<56x512xf32, #tpu.memory_space<vmem>>, vector<8x512xf32>
    %c0_55 = arith.constant 0 : index
    %c0_56 = arith.constant 0 : index
    %183 = vector.load %arg2[%c0_55, %c0_56] : memref<128x512xf32, #tpu.memory_space<vmem>>, vector<128x512xf32>
    %cst_57 = arith.constant dense<0.000000e+00> : vector<8x512xf32>
    %184 = tpu.matmul %176, %183, %cst_57 {dimension_numbers = #tpu.dot_dimension_numbers<[1], [0], [0], [1], [0, 0, 1, 1], [], []>} : vector<8x128xf32>, vector<128x512xf32>, vector<8x512xf32> -> vector<8x512xf32>
    %185 = arith.addf %182, %184 : vector<8x512xf32>
    %186 = vector.extract_strided_slice %185 {offsets = [0, 0], sizes = [8, 128], strides = [1, 1]} : vector<8x512xf32> to vector<8x128xf32>
    %187 = arith.negf %186 : vector<8x128xf32>
    %188 = math.exp %187 : vector<8x128xf32>
    %cst_58 = arith.constant 1.000000e+00 : f32
    %189 = vector.broadcast %cst_58 : f32 to vector<8x128xf32>
    %190 = arith.addf %189, %188 : vector<8x128xf32>
    %191 = arith.divf %189, %190 : vector<8x128xf32>
    %192 = vector.extract_strided_slice %185 {offsets = [0, 128], sizes = [8, 128], strides = [1, 1]} : vector<8x512xf32> to vector<8x128xf32>
    %193 = arith.negf %192 : vector<8x128xf32>
    %194 = math.exp %193 : vector<8x128xf32>
    %cst_59 = arith.constant 1.000000e+00 : f32
    %195 = vector.broadcast %cst_59 : f32 to vector<8x128xf32>
    %196 = arith.addf %195, %194 : vector<8x128xf32>
    %197 = arith.divf %195, %196 : vector<8x128xf32>
    %198 = vector.extract_strided_slice %185 {offsets = [0, 256], sizes = [8, 128], strides = [1, 1]} : vector<8x512xf32> to vector<8x128xf32>
    %199 = math.tanh %198 : vector<8x128xf32>
    %200 = vector.extract_strided_slice %185 {offsets = [0, 384], sizes = [8, 128], strides = [1, 1]} : vector<8x512xf32> to vector<8x128xf32>
    %201 = arith.negf %200 : vector<8x128xf32>
    %202 = math.exp %201 : vector<8x128xf32>
    %cst_60 = arith.constant 1.000000e+00 : f32
    %203 = vector.broadcast %cst_60 : f32 to vector<8x128xf32>
    %204 = arith.addf %203, %202 : vector<8x128xf32>
    %205 = arith.divf %203, %204 : vector<8x128xf32>
    %206 = arith.mulf %197, %174 : vector<8x128xf32>
    %207 = arith.mulf %191, %199 : vector<8x128xf32>
    %208 = arith.addf %206, %207 : vector<8x128xf32>
    %209 = math.tanh %208 : vector<8x128xf32>
    %210 = arith.mulf %205, %209 : vector<8x128xf32>
    %211 = arith.index_cast %180 : i32 to index
    %c0_61 = arith.constant 0 : index
    %212 = vector.load %arg4[%211, %c0_61] : memref<56x128xf32, #tpu.memory_space<vmem>>, vector<8x128xf32>
    tpu.vector_store %arg4[%211, %c0_61], %210 {strides = array<i32>} : memref<56x128xf32, #tpu.memory_space<vmem>>, vector<8x128xf32>,
    %c6_i32 = arith.constant 6 : i32
    %c8_i32_62 = arith.constant 8 : i32
    %213 = arith.muli %c6_i32, %c8_i32_62 : i32
    %214 = tpu.assume_multiple %213, 8 : i32
    %215 = arith.index_cast %214 : i32 to index
    %c0_63 = arith.constant 0 : index
    %216 = vector.load %arg5[%215, %c0_63] : memref<56x512xf32, #tpu.memory_space<vmem>>, vector<8x512xf32>
    %c0_64 = arith.constant 0 : index
    %c0_65 = arith.constant 0 : index
    %217 = vector.load %arg2[%c0_64, %c0_65] : memref<128x512xf32, #tpu.memory_space<vmem>>, vector<128x512xf32>
    %cst_66 = arith.constant dense<0.000000e+00> : vector<8x512xf32>
    %218 = tpu.matmul %210, %217, %cst_66 {dimension_numbers = #tpu.dot_dimension_numbers<[1], [0], [0], [1], [0, 0, 1, 1], [], []>} : vector<8x128xf32>, vector<128x512xf32>, vector<8x512xf32> -> vector<8x512xf32>
    %219 = arith.addf %216, %218 : vector<8x512xf32>
    %220 = vector.extract_strided_slice %219 {offsets = [0, 0], sizes = [8, 128], strides = [1, 1]} : vector<8x512xf32> to vector<8x128xf32>
    %221 = arith.negf %220 : vector<8x128xf32>
    %222 = math.exp %221 : vector<8x128xf32>
    %cst_67 = arith.constant 1.000000e+00 : f32
    %223 = vector.broadcast %cst_67 : f32 to vector<8x128xf32>
    %224 = arith.addf %223, %222 : vector<8x128xf32>
    %225 = arith.divf %223, %224 : vector<8x128xf32>
    %226 = vector.extract_strided_slice %219 {offsets = [0, 128], sizes = [8, 128], strides = [1, 1]} : vector<8x512xf32> to vector<8x128xf32>
    %227 = arith.negf %226 : vector<8x128xf32>
    %228 = math.exp %227 : vector<8x128xf32>
    %cst_68 = arith.constant 1.000000e+00 : f32
    %229 = vector.broadcast %cst_68 : f32 to vector<8x128xf32>
    %230 = arith.addf %229, %228 : vector<8x128xf32>
    %231 = arith.divf %229, %230 : vector<8x128xf32>
    %232 = vector.extract_strided_slice %219 {offsets = [0, 256], sizes = [8, 128], strides = [1, 1]} : vector<8x512xf32> to vector<8x128xf32>
    %233 = math.tanh %232 : vector<8x128xf32>
    %234 = vector.extract_strided_slice %219 {offsets = [0, 384], sizes = [8, 128], strides = [1, 1]} : vector<8x512xf32> to vector<8x128xf32>
    %235 = arith.negf %234 : vector<8x128xf32>
    %236 = math.exp %235 : vector<8x128xf32>
    %cst_69 = arith.constant 1.000000e+00 : f32
    %237 = vector.broadcast %cst_69 : f32 to vector<8x128xf32>
    %238 = arith.addf %237, %236 : vector<8x128xf32>
    %239 = arith.divf %237, %238 : vector<8x128xf32>
    %240 = arith.mulf %231, %208 : vector<8x128xf32>
    %241 = arith.mulf %225, %233 : vector<8x128xf32>
    %242 = arith.addf %240, %241 : vector<8x128xf32>
    %243 = math.tanh %242 : vector<8x128xf32>
    %244 = arith.mulf %239, %243 : vector<8x128xf32>
    %245 = arith.index_cast %214 : i32 to index
    %c0_70 = arith.constant 0 : index
    %246 = vector.load %arg4[%245, %c0_70] : memref<56x128xf32, #tpu.memory_space<vmem>>, vector<8x128xf32>
    tpu.vector_store %arg4[%245, %c0_70], %244 {strides = array<i32>} : memref<56x128xf32, #tpu.memory_space<vmem>>, vector<8x128xf32>,
    %c7_i32 = arith.constant 7 : i32
    return
  }
}

</mosaic_0001>

<llo_original>
// kernel: tpu_custom_call.1
$region0: #{tpu_custom_call.1}
  #allocation0 [shape = 'u32[]', space=smem, size = 0x4, offset = 0x4, fixed_abs, tag = 'smem constant byte address 0x4 - core index']
  #allocation1 [shape = 'u32[144,128]{1,0:T(1,128)}', space=vmem, size = 0x12000, scoped, tag = 'internal scratch']
  #allocation2 [shape = 'f32[56,512]{1,0:T(8,128)}', space=vmem, size = 0x1c000, scoped, tag = 'scratch operand']
  %s0 = inlined_call_operand.vmem [shape: f32[56,32], index: 0, kind: input, shape index: {}]
  %s1 = inlined_call_operand.hbm [shape: f32[32,512], index: 1, kind: input, shape index: {}]
  %s2 = inlined_call_operand.hbm [shape: f32[128,512], index: 2, kind: input, shape index: {}]
  %s3 = inlined_call_operand.vmem [shape: f32[1,512], index: 3, kind: input, shape index: {}]
  %s4 = inlined_call_operand.hbm [shape: f32[56,128], index: 4, kind: output, shape index: {}]
  %s5 = sld [smem:[#allocation0]]
  $region34: #{tpu_custom_call.1} parent=0
    _
  %s7 = ssub.s32 1, %s5
  %s8 = scalar_select 0, %s7, %s5
  $region1: #{tpu_custom_call.1} parent=0
    #allocation3 [shape = 'u8[65536]{0}', space=vmem, size = 0x10000, scoped, tag = 'input window, operand 1, single buffered']
    #allocation4 [shape = 's32[1]{0}', space=sflag, size = 0x4, scoped, tag = 'scoped memory for tpu_custom_call.1']
    #allocation5 [shape = 's32[1]{0}', space=sflag, size = 0x4, scoped, tag = 'scoped memory for tpu_custom_call.1']
    #allocation6 [shape = 'u8[262144]{0}', space=vmem, size = 0x40000, scoped, tag = 'input window, operand 2, single buffered']
    #allocation7 [shape = 's32[1]{0}', space=sflag, size = 0x4, scoped, tag = 'scoped memory for tpu_custom_call.1']
    #allocation8 [shape = 'u8[28672]{0}', space=vmem, size = 0x7000, scoped, tag = 'output window, operand 0, single buffered']
    %9 = vsyncpa [#allocation4], 0
    %10 = vsyncpa [#allocation7], 0
    %11 = vsyncpa [#allocation5], 0
    // Predicated region
    $region2: #{tpu_custom_call.1} parent=1 // pred_check
      _
    $region3: #{tpu_custom_call.1} parent=1 // pred_check_branch
      %13 = sbr.rel (0) target = $region5
    $region4: #{tpu_custom_call.1} parent=1 // pred_region
      _
    $region5: #{tpu_custom_call.1} parent=1 // pred_fallthru
      _
    // Predicated region
    $region6: #{tpu_custom_call.1} parent=1 // pred_check
      _
    $region7: #{tpu_custom_call.1} parent=1 // pred_check_branch
      %15 = sbr.rel (0) target = $region9
    $region8: #{tpu_custom_call.1} parent=1 // pred_region
      %s17 = ssub.s32 2048, 2048
      %18 = vsyncadd [#allocation4], %s17
      %s19 = sshll.u32 [#allocation3], 4
      %s20 = int_to_ptr.vmem [resolvable:$true] %s19
      %25 = dma.hbm_to_vmem [thread:$0]  %s1, 2048, %s20, [#allocation4], 512, 512, 32
    $region9: #{tpu_custom_call.1} parent=1 // pred_fallthru
      _
    // Predicated region
    $region10: #{tpu_custom_call.1} parent=1 // pred_check
      _
    $region11: #{tpu_custom_call.1} parent=1 // pred_check_branch
      %27 = sbr.rel (0) target = $region13
    $region12: #{tpu_custom_call.1} parent=1 // pred_region
      %s29 = ssub.s32 8192, 8192
      %30 = vsyncadd [#allocation7], %s29
      %s31 = sshll.u32 [#allocation6], 4
      %s32 = int_to_ptr.vmem [resolvable:$true] %s31
      %37 = dma.hbm_to_vmem [thread:$0]  %s2, 8192, %s32, [#allocation7], 512, 512, 32
    $region13: #{tpu_custom_call.1} parent=1 // pred_fallthru
      _
    // Predicated region
    $region14: #{tpu_custom_call.1} parent=1 // pred_check
      _
    $region15: #{tpu_custom_call.1} parent=1 // pred_check_branch
      %39 = sbr.rel (0) target = $region17
    $region16: #{tpu_custom_call.1} parent=1 // pred_region
      _
    $region17: #{tpu_custom_call.1} parent=1 // pred_fallthru
      _
    // Predicated region
    $region18: #{tpu_custom_call.1} parent=1 // pred_check
      _
    $region19: #{tpu_custom_call.1} parent=1 // pred_check_branch
      %41 = sbr.rel (0) target = $region21
    $region20: #{tpu_custom_call.1} parent=1 // pred_region
      %42 = dma.done [#allocation4], 2048
    $region21: #{tpu_custom_call.1} parent=1 // pred_fallthru
      _
    // Predicated region
    $region22: #{tpu_custom_call.1} parent=1 // pred_check
      _
    $region23: #{tpu_custom_call.1} parent=1 // pred_check_branch
      %44 = sbr.rel (0) target = $region25
    $region24: #{tpu_custom_call.1} parent=1 // pred_region
      %45 = dma.done [#allocation7], 8192
    $region25: #{tpu_custom_call.1} parent=1 // pred_fallthru
      _
    %v46 = vld [vmem:[%s0] sm:$0xff]
    %v47 = vld [vmem:[%s0 + $0x8] sm:$0xff]
    %v48 = vld [vmem:[%s0 + $0x10] sm:$0xff]
    %v49 = vld [vmem:[%s0 + $0x18] sm:$0xff]
    %v50 = vld [vmem:[%s0 + $0x20] sm:$0xff]
    %v51 = vld [vmem:[%s0 + $0x28] sm:$0xff]
    %v52 = vld [vmem:[%s0 + $0x30] sm:$0xff]
    %v53 = vld [vmem:[#allocation3] sm:$0xff]
    %v54 = vld [vmem:[#allocation3 + $0x8] sm:$0xff]
    %v55 = vld [vmem:[#allocation3 + $0x10] sm:$0xff]
    %v56 = vld [vmem:[#allocation3 + $0x18] sm:$0xff]
    %v57 = vld [vmem:[#allocation3 + $0x20] sm:$0xff]
    %v58 = vld [vmem:[#allocation3 + $0x28] sm:$0xff]
    %v59 = vld [vmem:[#allocation3 + $0x30] sm:$0xff]
    %v60 = vld [vmem:[#allocation3 + $0x38] sm:$0xff]
    %v61 = vld [vmem:[#allocation3 + $0x40] sm:$0xff]
    %v62 = vld [vmem:[#allocation3 + $0x48] sm:$0xff]
    %v63 = vld [vmem:[#allocation3 + $0x50] sm:$0xff]
    %v64 = vld [vmem:[#allocation3 + $0x58] sm:$0xff]
    %v65 = vld [vmem:[#allocation3 + $0x60] sm:$0xff]
    %v66 = vld [vmem:[#allocation3 + $0x68] sm:$0xff]
    %v67 = vld [vmem:[#allocation3 + $0x70] sm:$0xff]
    %v68 = vld [vmem:[#allocation3 + $0x78] sm:$0xff]
    %v69 = vld [vmem:[%s3] sm:$0xf]
    %v71 = vlaneseq
    %v72 = vshrl.u32 %v71, 7
    %v73 = vsub.s32 0, %v72
    %v74 = vrot.slane %v69, %v73
    %v75 = vlaneseq
    %v76 = vshrl.u32 %v75, 7
    %v77 = vsub.s32 1, %v76
    %v78 = vrot.slane %v69, %v77
    %v79 = vlaneseq
    %v80 = vshrl.u32 %v79, 7
    %v81 = vsub.s32 2, %v80
    %v82 = vrot.slane %v69, %v81
    %v83 = vlaneseq
    %v84 = vshrl.u32 %v83, 7
    %v85 = vsub.s32 3, %v84
    %v86 = vrot.slane %v69, %v85
    %vm91 = vcmask 261120
    %v93 = vsel %vm91, %v46, 0
    %v96 = vsel %vm91, %v47, 0
    %v99 = vsel %vm91, %v48, 0
    %v102 = vsel %vm91, %v49, 0
    %v105 = vsel %vm91, %v50, 0
    %v108 = vsel %vm91, %v51, 0
    %v111 = vsel %vm91, %v52, 0
    %113 = vmatprep.subr.mxu0 0.0
    %114 = vmatpush1.msra.mxu0 0.0
    %115 = vmatprep.subr.mxu0 0.0
    %116 = vmatpush1.msra.mxu0 0.0
    %117 = vmatprep.subr.mxu0 0.0
    %118 = vmatpush1.msra.mxu0 0.0
    %119 = vmatprep.subr.mxu0 0.0
    %120 = vmatpush1.msra.mxu0 0.0
    %121 = vmatprep.subr.mxu0 0.0
    %122 = vmatpush1.msra.mxu0 0.0
    %123 = vmatprep.subr.mxu0 0.0
    %124 = vmatpush1.msra.mxu0 0.0
    %125 = vmatprep.subr.mxu0 0.0
    %126 = vmatpush1.msra.mxu0 0.0
    %127 = vmatprep.subr.mxu0 0.0
    %128 = vmatpush1.msra.mxu0 0.0
    %129 = vmatprep.subr.mxu0 0.0
    %130 = vmatpush1.msra.mxu0 0.0
    %131 = vmatprep.subr.mxu0 0.0
    %132 = vmatpush1.msra.mxu0 0.0
    %133 = vmatprep.subr.mxu0 0.0
    %134 = vmatpush1.msra.mxu0 0.0
    %135 = vmatprep.subr.mxu0 0.0
    %136 = vmatpush1.msra.mxu0 0.0
    %137 = vmatprep.subr.mxu0 %v66
    %138 = vmatpush1.msra.mxu0 %v65
    %139 = vmatprep.subr.mxu0 %v62
    %140 = vmatpush1.msra.mxu0 %v61
    %141 = vmatprep.subr.mxu0 %v58
    %142 = vmatpush1.msra.mxu0 %v57
    %143 = vmatprep.subr.mxu0 %v54
    %144 = vmatpush1.msra.mxu0 %v53
    %145 = vmatprep.subr.mxu0 0.0
    %146 = vmatpush2.msra.mxu0 0.0
    %147 = vmatprep.subr.mxu0 0.0
    %148 = vmatpush2.msra.mxu0 0.0
    %149 = vmatprep.subr.mxu0 0.0
    %150 = vmatpush2.msra.mxu0 0.0
    %151 = vmatprep.subr.mxu0 0.0
    %152 = vmatpush2.msra.mxu0 0.0
    %153 = vmatprep.subr.mxu0 0.0
    %154 = vmatpush2.msra.mxu0 0.0
    %155 = vmatprep.subr.mxu0 0.0
    %156 = vmatpush2.msra.mxu0 0.0
    %157 = vmatprep.subr.mxu0 0.0
    %158 = vmatpush2.msra.mxu0 0.0
    %159 = vmatprep.subr.mxu0 0.0
    %160 = vmatpush2.msra.mxu0 0.0
    %161 = vmatprep.subr.mxu0 0.0
    %162 = vmatpush2.msra.mxu0 0.0
    %163 = vmatprep.subr.mxu0 0.0
    %164 = vmatpush2.msra.mxu0 0.0
    %165 = vmatprep.subr.mxu0 0.0
    %166 = vmatpush2.msra.mxu0 0.0
    %167 = vmatprep.subr.mxu0 0.0
    %168 = vmatpush2.msra.mxu0 0.0
    %169 = vmatprep.subr.mxu0 0.0
    %170 = vmatpush2.msra.mxu0 0.0
    %171 = vmatprep.subr.mxu0 0.0
    %172 = vmatpush2.msra.mxu0 0.0
    %173 = vmatprep.subr.mxu0 0.0
    %174 = vmatpush2.msra.mxu0 0.0
    %175 = vmatprep.subr.mxu0 0.0
    %176 = vmatpush2.msra.mxu0 0.0
    %177 = vmatprep.mubr.f32.mxu0 0.0
    %178 = vmatmul.mubr.f32.gmra.mxu0 %v93
    %v179 = vpop.f32.mrf.mxu0
    %v180 = vadd.f32 %v74, %v179
    %v181 = vpop.f32.mrf.mxu0
    %v182 = vadd.f32 %v78, %v181
    %183 = vmatprep.mubr.f32.mxu0 0.0
    %184 = vmatmul.mubr.f32.gmra.mxu0 %v96
    %v185 = vpop.f32.mrf.mxu0
    %v186 = vadd.f32 %v74, %v185
    %v187 = vpop.f32.mrf.mxu0
    %v188 = vadd.f32 %v78, %v187
    %189 = vmatprep.mubr.f32.mxu0 0.0
    %190 = vmatmul.mubr.f32.gmra.mxu0 %v99
    %v191 = vpop.f32.mrf.mxu0
    %v192 = vadd.f32 %v74, %v191
    %v193 = vpop.f32.mrf.mxu0
    %v194 = vadd.f32 %v78, %v193
    %195 = vmatprep.mubr.f32.mxu0 0.0
    %196 = vmatmul.mubr.f32.gmra.mxu0 %v102
    %v197 = vpop.f32.mrf.mxu0
    %v198 = vadd.f32 %v74, %v197
    %v199 = vpop.f32.mrf.mxu0
    %v200 = vadd.f32 %v78, %v199
    %201 = vmatprep.mubr.f32.mxu0 0.0
    %202 = vmatmul.mubr.f32.gmra.mxu0 %v105
    %v203 = vpop.f32.mrf.mxu0
    %v204 = vadd.f32 %v74, %v203
    %v205 = vpop.f32.mrf.mxu0
    %v206 = vadd.f32 %v78, %v205
    %207 = vmatprep.mubr.f32.mxu0 0.0
    %208 = vmatmul.mubr.f32.gmra.mxu0 %v108
    %v209 = vpop.f32.mrf.mxu0
    %v210 = vadd.f32 %v74, %v209
    %v211 = vpop.f32.mrf.mxu0
    %v212 = vadd.f32 %v78, %v211
    %213 = vmatprep.mubr.f32.mxu0 0.0
    %214 = vmatmul.mubr.f32.gmra.mxu0 %v111
    %v215 = vpop.f32.mrf.mxu0
    %v216 = vadd.f32 %v74, %v215
    %v217 = vpop.f32.mrf.mxu0
    %v218 = vadd.f32 %v78, %v217
    %219 = vdwg.mxu0
    %220 = vmatprep.subr.mxu0 0.0
    %221 = vmatpush1.msra.mxu0 0.0
    %222 = vmatprep.subr.mxu0 0.0
    %223 = vmatpush1.msra.mxu0 0.0
    %224 = vmatprep.subr.mxu0 0.0
    %225 = vmatpush1.msra.mxu0 0.0
    %226 = vmatprep.subr.mxu0 0.0
    %227 = vmatpush1.msra.mxu0 0.0
    %228 = vmatprep.subr.mxu0 0.0
    %229 = vmatpush1.msra.mxu0 0.0
    %230 = vmatprep.subr.mxu0 0.0
    %231 = vmatpush1.msra.mxu0 0.0
    %232 = vmatprep.subr.mxu0 0.0
    %233 = vmatpush1.msra.mxu0 0.0
    %234 = vmatprep.subr.mxu0 0.0
    %235 = vmatpush1.msra.mxu0 0.0
    %236 = vmatprep.subr.mxu0 0.0
    %237 = vmatpush1.msra.mxu0 0.0
    %238 = vmatprep.subr.mxu0 0.0
    %239 = vmatpush1.msra.mxu0 0.0
    %240 = vmatprep.subr.mxu0 0.0
    %241 = vmatpush1.msra.mxu0 0.0
    %242 = vmatprep.subr.mxu0 0.0
    %243 = vmatpush1.msra.mxu0 0.0
    %244 = vmatprep.subr.mxu0 %v68
    %245 = vmatpush1.msra.mxu0 %v67
    %246 = vmatprep.subr.mxu0 %v64
    %247 = vmatpush1.msra.mxu0 %v63
    %248 = vmatprep.subr.mxu0 %v60
    %249 = vmatpush1.msra.mxu0 %v59
    %250 = vmatprep.subr.mxu0 %v56
    %251 = vmatpush1.msra.mxu0 %v55
    %252 = vmatprep.subr.mxu0 0.0
    %253 = vmatpush2.msra.mxu0 0.0
    %254 = vmatprep.subr.mxu0 0.0
    %255 = vmatpush2.msra.mxu0 0.0
    %256 = vmatprep.subr.mxu0 0.0
    %257 = vmatpush2.msra.mxu0 0.0
    %258 = vmatprep.subr.mxu0 0.0
    %259 = vmatpush2.msra.mxu0 0.0
    %260 = vmatprep.subr.mxu0 0.0
    %261 = vmatpush2.msra.mxu0 0.0
    %262 = vmatprep.subr.mxu0 0.0
    %263 = vmatpush2.msra.mxu0 0.0
    %264 = vmatprep.subr.mxu0 0.0
    %265 = vmatpush2.msra.mxu0 0.0
    %266 = vmatprep.subr.mxu0 0.0
    %267 = vmatpush2.msra.mxu0 0.0
    %268 = vmatprep.subr.mxu0 0.0
    %269 = vmatpush2.msra.mxu0 0.0
    %270 = vmatprep.subr.mxu0 0.0
    %271 = vmatpush2.msra.mxu0 0.0
    %272 = vmatprep.subr.mxu0 0.0
    %273 = vmatpush2.msra.mxu0 0.0
    %274 = vmatprep.subr.mxu0 0.0
    %275 = vmatpush2.msra.mxu0 0.0
    %276 = vmatprep.subr.mxu0 0.0
    %277 = vmatpush2.msra.mxu0 0.0
    %278 = vmatprep.subr.mxu0 0.0
    %279 = vmatpush2.msra.mxu0 0.0
    %280 = vmatprep.subr.mxu0 0.0
    %281 = vmatpush2.msra.mxu0 0.0
    %282 = vmatprep.subr.mxu0 0.0
    %283 = vmatpush2.msra.mxu0 0.0
    %284 = vmatprep.mubr.f32.mxu0 0.0
    %285 = vmatmul.mubr.f32.gmra.mxu0 %v93
    %v286 = vpop.f32.mrf.mxu0
    %v287 = vadd.f32 %v82, %v286
    %v288 = vpop.f32.mrf.mxu0
    %v289 = vadd.f32 %v86, %v288
    %290 = vmatprep.mubr.f32.mxu0 0.0
    %291 = vmatmul.mubr.f32.gmra.mxu0 %v96
    %v292 = vpop.f32.mrf.mxu0
    %v293 = vadd.f32 %v82, %v292
    %v294 = vpop.f32.mrf.mxu0
    %v295 = vadd.f32 %v86, %v294
    %296 = vmatprep.mubr.f32.mxu0 0.0
    %297 = vmatmul.mubr.f32.gmra.mxu0 %v99
    %v298 = vpop.f32.mrf.mxu0
    %v299 = vadd.f32 %v82, %v298
    %v300 = vpop.f32.mrf.mxu0
    %v301 = vadd.f32 %v86, %v300
    %302 = vmatprep.mubr.f32.mxu0 0.0
    %303 = vmatmul.mubr.f32.gmra.mxu0 %v102
    %v304 = vpop.f32.mrf.mxu0
    %v305 = vadd.f32 %v82, %v304
    %v306 = vpop.f32.mrf.mxu0
    %v307 = vadd.f32 %v86, %v306
    %308 = vmatprep.mubr.f32.mxu0 0.0
    %309 = vmatmul.mubr.f32.gmra.mxu0 %v105
    %v310 = vpop.f32.mrf.mxu0
    %v311 = vadd.f32 %v82, %v310
    %v312 = vpop.f32.mrf.mxu0
    %v313 = vadd.f32 %v86, %v312
    %314 = vmatprep.mubr.f32.mxu0 0.0
    %315 = vmatmul.mubr.f32.gmra.mxu0 %v108
    %v316 = vpop.f32.mrf.mxu0
    %v317 = vadd.f32 %v82, %v316
    %v318 = vpop.f32.mrf.mxu0
    %v319 = vadd.f32 %v86, %v318
    %320 = vmatprep.mubr.f32.mxu0 0.0
    %321 = vmatmul.mubr.f32.gmra.mxu0 %v111
    %v322 = vpop.f32.mrf.mxu0
    %v323 = vadd.f32 %v82, %v322
    %v324 = vpop.f32.mrf.mxu0
    %v325 = vadd.f32 %v86, %v324
    %326 = vdwg.mxu0
    %327 = vst [vmem:[#allocation2] sm:$0xff] %v180
    %328 = vst [vmem:[#allocation2 + $0x8] sm:$0xff] %v182
    %329 = vst [vmem:[#allocation2 + $0x10] sm:$0xff] %v287
    %330 = vst [vmem:[#allocation2 + $0x18] sm:$0xff] %v289
    %331 = vst [vmem:[#allocation2 + $0x20] sm:$0xff] %v186
    %332 = vst [vmem:[#allocation2 + $0x28] sm:$0xff] %v188
    %333 = vst [vmem:[#allocation2 + $0x30] sm:$0xff] %v293
    %334 = vst [vmem:[#allocation2 + $0x38] sm:$0xff] %v295
    %335 = vst [vmem:[#allocation2 + $0x40] sm:$0xff] %v192
    %336 = vst [vmem:[#allocation2 + $0x48] sm:$0xff] %v194
    %337 = vst [vmem:[#allocation2 + $0x50] sm:$0xff] %v299
    %338 = vst [vmem:[#allocation2 + $0x58] sm:$0xff] %v301
    %339 = vst [vmem:[#allocation2 + $0x60] sm:$0xff] %v198
    %340 = vst [vmem:[#allocation2 + $0x68] sm:$0xff] %v200
    %341 = vst [vmem:[#allocation2 + $0x70] sm:$0xff] %v305
    %342 = vst [vmem:[#allocation2 + $0x78] sm:$0xff] %v307
    %343 = vst [vmem:[#allocation2 + $0x80] sm:$0xff] %v204
    %344 = vst [vmem:[#allocation2 + $0x88] sm:$0xff] %v206
    %345 = vst [vmem:[#allocation2 + $0x90] sm:$0xff] %v311
    %346 = vst [vmem:[#allocation2 + $0x98] sm:$0xff] %v313
    %347 = vst [vmem:[#allocation2 + $0xa0] sm:$0xff] %v210
    %348 = vst [vmem:[#allocation2 + $0xa8] sm:$0xff] %v212
    %349 = vst [vmem:[#allocation2 + $0xb0] sm:$0xff] %v317
    %350 = vst [vmem:[#allocation2 + $0xb8] sm:$0xff] %v319
    %351 = vst [vmem:[#allocation2 + $0xc0] sm:$0xff] %v216
    %352 = vst [vmem:[#allocation2 + $0xc8] sm:$0xff] %v218
    %353 = vst [vmem:[#allocation2 + $0xd0] sm:$0xff] %v323
    %354 = vst [vmem:[#allocation2 + $0xd8] sm:$0xff] %v325
    %s355 = smul.u32 0, 4
    %s356 = smul.addr %s355, 8
    %s357 = scalar_lea.vmem [#allocation2], %s356
    %v358 = vld [vmem:[%s357] sm:$0xff]
    %v359 = vld [vmem:[%s357 + $0x8] sm:$0xff]
    %v360 = vld [vmem:[%s357 + $0x10] sm:$0xff]
    %v361 = vld [vmem:[%s357 + $0x18] sm:$0xff]
    %v362 = vld [vmem:[#allocation6] sm:$0xff]
    %v363 = vld [vmem:[#allocation6 + $0x8] sm:$0xff]
    %v364 = vld [vmem:[#allocation6 + $0x10] sm:$0xff]
    %v365 = vld [vmem:[#allocation6 + $0x18] sm:$0xff]
    %v366 = vld [vmem:[#allocation6 + $0x20] sm:$0xff]
    %v367 = vld [vmem:[#allocation6 + $0x28] sm:$0xff]
    %v368 = vld [vmem:[#allocation6 + $0x30] sm:$0xff]
    %v369 = vld [vmem:[#allocation6 + $0x38] sm:$0xff]
    %v370 = vld [vmem:[#allocation6 + $0x40] sm:$0xff]
    %v371 = vld [vmem:[#allocation6 + $0x48] sm:$0xff]
    %v372 = vld [vmem:[#allocation6 + $0x50] sm:$0xff]
    %v373 = vld [vmem:[#allocation6 + $0x58] sm:$0xff]
    %v374 = vld [vmem:[#allocation6 + $0x60] sm:$0xff]
    %v375 = vld [vmem:[#allocation6 + $0x68] sm:$0xff]
    %v376 = vld [vmem:[#allocation6 + $0x70] sm:$0xff]
    %v377 = vld [vmem:[#allocation6 + $0x78] sm:$0xff]
    %v378 = vld [vmem:[#allocation6 + $0x80] sm:$0xff]
    %v379 = vld [vmem:[#allocation6 + $0x88] sm:$0xff]
    %v380 = vld [vmem:[#allocation6 + $0x90] sm:$0xff]
    %v381 = vld [vmem:[#allocation6 + $0x98] sm:$0xff]
    %v382 = vld [vmem:[#allocation6 + $0xa0] sm:$0xff]
    %v383 = vld [vmem:[#allocation6 + $0xa8] sm:$0xff]
    %v384 = vld [vmem:[#allocation6 + $0xb0] sm:$0xff]
    %v385 = vld [vmem:[#allocation6 + $0xb8] sm:$0xff]
    %v386 = vld [vmem:[#allocation6 + $0xc0] sm:$0xff]
    %v387 = vld [vmem:[#allocation6 + $0xc8] sm:$0xff]
    %v388 = vld [vmem:[#allocation6 + $0xd0] sm:$0xff]
    %v389 = vld [vmem:[#allocation6 + $0xd8] sm:$0xff]
    %v390 = vld [vmem:[#allocation6 + $0xe0] sm:$0xff]
    %v391 = vld [vmem:[#allocation6 + $0xe8] sm:$0xff]
    %v392 = vld [vmem:[#allocation6 + $0xf0] sm:$0xff]
    %v393 = vld [vmem:[#allocation6 + $0xf8] sm:$0xff]
    %v394 = vld [vmem:[#allocation6 + $0x100] sm:$0xff]
    %v395 = vld [vmem:[#allocation6 + $0x108] sm:$0xff]
    %v396 = vld [vmem:[#allocation6 + $0x110] sm:$0xff]
    %v397 = vld [vmem:[#allocation6 + $0x118] sm:$0xff]
    %v398 = vld [vmem:[#allocation6 + $0x120] sm:$0xff]
    %v399 = vld [vmem:[#allocation6 + $0x128] sm:$0xff]
    %v400 = vld [vmem:[#allocation6 + $0x130] sm:$0xff]
    %v401 = vld [vmem:[#allocation6 + $0x138] sm:$0xff]
    %v402 = vld [vmem:[#allocation6 + $0x140] sm:$0xff]
    %v403 = vld [vmem:[#allocation6 + $0x148] sm:$0xff]
    %v404 = vld [vmem:[#allocation6 + $0x150] sm:$0xff]
    %v405 = vld [vmem:[#allocation6 + $0x158] sm:$0xff]
    %v406 = vld [vmem:[#allocation6 + $0x160] sm:$0xff]
    %v407 = vld [vmem:[#allocation6 + $0x168] sm:$0xff]
    %v408 = vld [vmem:[#allocation6 + $0x170] sm:$0xff]
    %v409 = vld [vmem:[#allocation6 + $0x178] sm:$0xff]
    %v410 = vld [vmem:[#allocation6 + $0x180] sm:$0xff]
    %v411 = vld [vmem:[#allocation6 + $0x188] sm:$0xff]
    %v412 = vld [vmem:[#allocation6 + $0x190] sm:$0xff]
    %v413 = vld [vmem:[#allocation6 + $0x198] sm:$0xff]
    %v414 = vld [vmem:[#allocation6 + $0x1a0] sm:$0xff]
    %v415 = vld [vmem:[#allocation6 + $0x1a8] sm:$0xff]
    %v416 = vld [vmem:[#allocation6 + $0x1b0] sm:$0xff]
    %v417 = vld [vmem:[#allocation6 + $0x1b8] sm:$0xff]
    %v418 = vld [vmem:[#allocation6 + $0x1c0] sm:$0xff]
    %v419 = vld [vmem:[#allocation6 + $0x1c8] sm:$0xff]
    %v420 = vld [vmem:[#allocation6 + $0x1d0] sm:$0xff]
    %v421 = vld [vmem:[#allocation6 + $0x1d8] sm:$0xff]
    %v422 = vld [vmem:[#allocation6 + $0x1e0] sm:$0xff]
    %v423 = vld [vmem:[#allocation6 + $0x1e8] sm:$0xff]
    %v424 = vld [vmem:[#allocation6 + $0x1f0] sm:$0xff]
    %v425 = vld [vmem:[#allocation6 + $0x1f8] sm:$0xff]
    %426 = vmatprep.subr.mxu0 %v423
    %427 = vmatpush1.msra.mxu0 %v422
    %428 = vmatprep.subr.mxu0 %v419
    %429 = vmatpush1.msra.mxu0 %v418
    %430 = vmatprep.subr.mxu0 %v415
    %431 = vmatpush1.msra.mxu0 %v414
    %432 = vmatprep.subr.mxu0 %v411
    %433 = vmatpush1.msra.mxu0 %v410
    %434 = vmatprep.subr.mxu0 %v407
    %435 = vmatpush1.msra.mxu0 %v406
    %436 = vmatprep.subr.mxu0 %v403
    %437 = vmatpush1.msra.mxu0 %v402
    %438 = vmatprep.subr.mxu0 %v399
    %439 = vmatpush1.msra.mxu0 %v398
    %440 = vmatprep.subr.mxu0 %v395
    %441 = vmatpush1.msra.mxu0 %v394
    %442 = vmatprep.subr.mxu0 %v391
    %443 = vmatpush1.msra.mxu0 %v390
    %444 = vmatprep.subr.mxu0 %v387
    %445 = vmatpush1.msra.mxu0 %v386
    %446 = vmatprep.subr.mxu0 %v383
    %447 = vmatpush1.msra.mxu0 %v382
    %448 = vmatprep.subr.mxu0 %v379
    %449 = vmatpush1.msra.mxu0 %v378
    %450 = vmatprep.subr.mxu0 %v375
    %451 = vmatpush1.msra.mxu0 %v374
    %452 = vmatprep.subr.mxu0 %v371
    %453 = vmatpush1.msra.mxu0 %v370
    %454 = vmatprep.subr.mxu0 %v367
    %455 = vmatpush1.msra.mxu0 %v366
    %456 = vmatprep.subr.mxu0 %v363
    %457 = vmatpush1.msra.mxu0 %v362
    %458 = vmatprep.subr.mxu0 0.0
    %459 = vmatpush2.msra.mxu0 0.0
    %460 = vmatprep.subr.mxu0 0.0
    %461 = vmatpush2.msra.mxu0 0.0
    %462 = vmatprep.subr.mxu0 0.0
    %463 = vmatpush2.msra.mxu0 0.0
    %464 = vmatprep.subr.mxu0 0.0
    %465 = vmatpush2.msra.mxu0 0.0
    %466 = vmatprep.subr.mxu0 0.0
    %467 = vmatpush2.msra.mxu0 0.0
    %468 = vmatprep.subr.mxu0 0.0
    %469 = vmatpush2.msra.mxu0 0.0
    %470 = vmatprep.subr.mxu0 0.0
    %471 = vmatpush2.msra.mxu0 0.0
    %472 = vmatprep.subr.mxu0 0.0
    %473 = vmatpush2.msra.mxu0 0.0
    %474 = vmatprep.subr.mxu0 0.0
    %475 = vmatpush2.msra.mxu0 0.0
    %476 = vmatprep.subr.mxu0 0.0
    %477 = vmatpush2.msra.mxu0 0.0
    %478 = vmatprep.subr.mxu0 0.0
    %479 = vmatpush2.msra.mxu0 0.0
    %480 = vmatprep.subr.mxu0 0.0
    %481 = vmatpush2.msra.mxu0 0.0
    %482 = vmatprep.subr.mxu0 0.0
    %483 = vmatpush2.msra.mxu0 0.0
    %484 = vmatprep.subr.mxu0 0.0
    %485 = vmatpush2.msra.mxu0 0.0
    %486 = vmatprep.subr.mxu0 0.0
    %487 = vmatpush2.msra.mxu0 0.0
    %488 = vmatprep.subr.mxu0 0.0
    %489 = vmatpush2.msra.mxu0 0.0
    %490 = vmatprep.mubr.f32.mxu0 0.0
    %491 = vmatmul.mubr.f32.gmra.mxu0 0.0
    %v492 = vpop.f32.mrf.mxu0
    %v493 = vadd.f32 0.0, %v492
    %v494 = vpop.f32.mrf.mxu0
    %v495 = vadd.f32 0.0, %v494
    %496 = vdwg.mxu0
    %497 = vmatprep.subr.mxu0 %v425
    %498 = vmatpush1.msra.mxu0 %v424
    %499 = vmatprep.subr.mxu0 %v421
    %500 = vmatpush1.msra.mxu0 %v420
    %501 = vmatprep.subr.mxu0 %v417
    %502 = vmatpush1.msra.mxu0 %v416
    %503 = vmatprep.subr.mxu0 %v413
    %504 = vmatpush1.msra.mxu0 %v412
    %505 = vmatprep.subr.mxu0 %v409
    %506 = vmatpush1.msra.mxu0 %v408
    %507 = vmatprep.subr.mxu0 %v405
    %508 = vmatpush1.msra.mxu0 %v404
    %509 = vmatprep.subr.mxu0 %v401
    %510 = vmatpush1.msra.mxu0 %v400
    %511 = vmatprep.subr.mxu0 %v397
    %512 = vmatpush1.msra.mxu0 %v396
    %513 = vmatprep.subr.mxu0 %v393
    %514 = vmatpush1.msra.mxu0 %v392
    %515 = vmatprep.subr.mxu0 %v389
    %516 = vmatpush1.msra.mxu0 %v388
    %517 = vmatprep.subr.mxu0 %v385
    %518 = vmatpush1.msra.mxu0 %v384
    %519 = vmatprep.subr.mxu0 %v381
    %520 = vmatpush1.msra.mxu0 %v380
    %521 = vmatprep.subr.mxu0 %v377
    %522 = vmatpush1.msra.mxu0 %v376
    %523 = vmatprep.subr.mxu0 %v373
    %524 = vmatpush1.msra.mxu0 %v372
    %525 = vmatprep.subr.mxu0 %v369
    %526 = vmatpush1.msra.mxu0 %v368
    %527 = vmatprep.subr.mxu0 %v365
    %528 = vmatpush1.msra.mxu0 %v364
    %529 = vmatprep.subr.mxu0 0.0
    %530 = vmatpush2.msra.mxu0 0.0
    %531 = vmatprep.subr.mxu0 0.0
    %532 = vmatpush2.msra.mxu0 0.0
    %533 = vmatprep.subr.mxu0 0.0
    %534 = vmatpush2.msra.mxu0 0.0
    %535 = vmatprep.subr.mxu0 0.0
    %536 = vmatpush2.msra.mxu0 0.0
    %537 = vmatprep.subr.mxu0 0.0
    %538 = vmatpush2.msra.mxu0 0.0
    %539 = vmatprep.subr.mxu0 0.0
    %540 = vmatpush2.msra.mxu0 0.0
    %541 = vmatprep.subr.mxu0 0.0
    %542 = vmatpush2.msra.mxu0 0.0
    %543 = vmatprep.subr.mxu0 0.0
    %544 = vmatpush2.msra.mxu0 0.0
    %545 = vmatprep.subr.mxu0 0.0
    %546 = vmatpush2.msra.mxu0 0.0
    %547 = vmatprep.subr.mxu0 0.0
    %548 = vmatpush2.msra.mxu0 0.0
    %549 = vmatprep.subr.mxu0 0.0
    %550 = vmatpush2.msra.mxu0 0.0
    %551 = vmatprep.subr.mxu0 0.0
    %552 = vmatpush2.msra.mxu0 0.0
    %553 = vmatprep.subr.mxu0 0.0
    %554 = vmatpush2.msra.mxu0 0.0
    %555 = vmatprep.subr.mxu0 0.0
    %556 = vmatpush2.msra.mxu0 0.0
    %557 = vmatprep.subr.mxu0 0.0
    %558 = vmatpush2.msra.mxu0 0.0
    %559 = vmatprep.subr.mxu0 0.0
    %560 = vmatpush2.msra.mxu0 0.0
    %561 = vmatprep.mubr.f32.mxu0 0.0
    %562 = vmatmul.mubr.f32.gmra.mxu0 0.0
    %v563 = vpop.f32.mrf.mxu0
    %v564 = vadd.f32 0.0, %v563
    %v565 = vpop.f32.mrf.mxu0
    %v566 = vadd.f32 0.0, %v565
    %567 = vdwg.mxu0
    %v568 = vadd.f32 %v358, %v493
    %v569 = vadd.f32 %v359, %v495
    %v570 = vadd.f32 %v360, %v564
    %v571 = vadd.f32 %v361, %v566
    %v572 = vxor.u32 %v568, 2147483648
    %v573 = vmul.f32 %v572, 1.442695
    %v574 = vpow.pop %v573
    %v575 = vadd.f32 %v574, 1.0
    %v576 = vrcp.pop %v575
    %v577 = vmul.f32 1.0, %v576
    %v578 = vxor.u32 %v569, 2147483648
    %v579 = vmul.f32 %v578, 1.442695
    %v580 = vpow.pop %v579
    %v581 = vadd.f32 %v580, 1.0
    %v582 = vrcp.pop %v581
    %v583 = vmul.f32 1.0, %v582
    %v584 = vtanh.pop %v570
    %v585 = vxor.u32 %v571, 2147483648
    %v586 = vmul.f32 %v585, 1.442695
    %v587 = vpow.pop %v586
    %v588 = vadd.f32 %v587, 1.0
    %v589 = vrcp.pop %v588
    %v590 = vmul.f32 1.0, %v589
    %v591 = vmul.f32 %v583, 0.0
    %v592 = vmul.f32 %v577, %v584
    %v593 = vadd.f32 %v591, %v592
    %v594 = vtanh.pop %v593
    %v595 = vmul.f32 %v590, %v594
    %596 = vst [vmem:[#allocation8] sm:$0xff] %v595
    %s597 = smul.u32 1, 4
    %s598 = smul.addr %s597, 8
    %s599 = scalar_lea.vmem [#allocation2], %s598
    %v600 = vld [vmem:[%s599] sm:$0xff]
    %v601 = vld [vmem:[%s599 + $0x8] sm:$0xff]
    %v602 = vld [vmem:[%s599 + $0x10] sm:$0xff]
    %v603 = vld [vmem:[%s599 + $0x18] sm:$0xff]
    %v604 = vld [vmem:[#allocation6] sm:$0xff]
    %v605 = vld [vmem:[#allocation6 + $0x8] sm:$0xff]
    %v606 = vld [vmem:[#allocation6 + $0x10] sm:$0xff]
    %v607 = vld [vmem:[#allocation6 + $0x18] sm:$0xff]
    %v608 = vld [vmem:[#allocation6 + $0x20] sm:$0xff]
    %v609 = vld [vmem:[#allocation6 + $0x28] sm:$0xff]
    %v610 = vld [vmem:[#allocation6 + $0x30] sm:$0xff]
    %v611 = vld [vmem:[#allocation6 + $0x38] sm:$0xff]
    %v612 = vld [vmem:[#allocation6 + $0x40] sm:$0xff]
    %v613 = vld [vmem:[#allocation6 + $0x48] sm:$0xff]
    %v614 = vld [vmem:[#allocation6 + $0x50] sm:$0xff]
    %v615 = vld [vmem:[#allocation6 + $0x58] sm:$0xff]
    %v616 = vld [vmem:[#allocation6 + $0x60] sm:$0xff]
    %v617 = vld [vmem:[#allocation6 + $0x68] sm:$0xff]
    %v618 = vld [vmem:[#allocation6 + $0x70] sm:$0xff]
    %v619 = vld [vmem:[#allocation6 + $0x78] sm:$0xff]
    %v620 = vld [vmem:[#allocation6 + $0x80] sm:$0xff]
    %v621 = vld [vmem:[#allocation6 + $0x88] sm:$0xff]
    %v622 = vld [vmem:[#allocation6 + $0x90] sm:$0xff]
    %v623 = vld [vmem:[#allocation6 + $0x98] sm:$0xff]
    %v624 = vld [vmem:[#allocation6 + $0xa0] sm:$0xff]
    %v625 = vld [vmem:[#allocation6 + $0xa8] sm:$0xff]
    %v626 = vld [vmem:[#allocation6 + $0xb0] sm:$0xff]
    %v627 = vld [vmem:[#allocation6 + $0xb8] sm:$0xff]
    %v628 = vld [vmem:[#allocation6 + $0xc0] sm:$0xff]
    %v629 = vld [vmem:[#allocation6 + $0xc8] sm:$0xff]
    %v630 = vld [vmem:[#allocation6 + $0xd0] sm:$0xff]
    %v631 = vld [vmem:[#allocation6 + $0xd8] sm:$0xff]
    %v632 = vld [vmem:[#allocation6 + $0xe0] sm:$0xff]
    %v633 = vld [vmem:[#allocation6 + $0xe8] sm:$0xff]
    %v634 = vld [vmem:[#allocation6 + $0xf0] sm:$0xff]
    %v635 = vld [vmem:[#allocation6 + $0xf8] sm:$0xff]
    %v636 = vld [vmem:[#allocation6 + $0x100] sm:$0xff]
    %v637 = vld [vmem:[#allocation6 + $0x108] sm:$0xff]
    %v638 = vld [vmem:[#allocation6 + $0x110] sm:$0xff]
    %v639 = vld [vmem:[#allocation6 + $0x118] sm:$0xff]
    %v640 = vld [vmem:[#allocation6 + $0x120] sm:$0xff]
    %v641 = vld [vmem:[#allocation6 + $0x128] sm:$0xff]
    %v642 = vld [vmem:[#allocation6 + $0x130] sm:$0xff]
    %v643 = vld [vmem:[#allocation6 + $0x138] sm:$0xff]
    %v644 = vld [vmem:[#allocation6 + $0x140] sm:$0xff]
    %v645 = vld [vmem:[#allocation6 + $0x148] sm:$0xff]
    %v646 = vld [vmem:[#allocation6 + $0x150] sm:$0xff]
    %v647 = vld [vmem:[#allocation6 + $0x158] sm:$0xff]
    %v648 = vld [vmem:[#allocation6 + $0x160] sm:$0xff]
    %v649 = vld [vmem:[#allocation6 + $0x168] sm:$0xff]
    %v650 = vld [vmem:[#allocation6 + $0x170] sm:$0xff]
    %v651 = vld [vmem:[#allocation6 + $0x178] sm:$0xff]
    %v652 = vld [vmem:[#allocation6 + $0x180] sm:$0xff]
    %v653 = vld [vmem:[#allocation6 + $0x188] sm:$0xff]
    %v654 = vld [vmem:[#allocation6 + $0x190] sm:$0xff]
    %v655 = vld [vmem:[#allocation6 + $0x198] sm:$0xff]
    %v656 = vld [vmem:[#allocation6 + $0x1a0] sm:$0xff]
    %v657 = vld [vmem:[#allocation6 + $0x1a8] sm:$0xff]
    %v658 = vld [vmem:[#allocation6 + $0x1b0] sm:$0xff]
    %v659 = vld [vmem:[#allocation6 + $0x1b8] sm:$0xff]
    %v660 = vld [vmem:[#allocation6 + $0x1c0] sm:$0xff]
    %v661 = vld [vmem:[#allocation6 + $0x1c8] sm:$0xff]
    %v662 = vld [vmem:[#allocation6 + $0x1d0] sm:$0xff]
    %v663 = vld [vmem:[#allocation6 + $0x1d8] sm:$0xff]
    %v664 = vld [vmem:[#allocation6 + $0x1e0] sm:$0xff]
    %v665 = vld [vmem:[#allocation6 + $0x1e8] sm:$0xff]
    %v666 = vld [vmem:[#allocation6 + $0x1f0] sm:$0xff]
    %v667 = vld [vmem:[#allocation6 + $0x1f8] sm:$0xff]
    %668 = vmatprep.subr.mxu0 %v665
    %669 = vmatpush1.msra.mxu0 %v664
    %670 = vmatprep.subr.mxu0 %v661
    %671 = vmatpush1.msra.mxu0 %v660
    %672 = vmatprep.subr.mxu0 %v657
    %673 = vmatpush1.msra.mxu0 %v656
    %674 = vmatprep.subr.mxu0 %v653
    %675 = vmatpush1.msra.mxu0 %v652
    %676 = vmatprep.subr.mxu0 %v649
    %677 = vmatpush1.msra.mxu0 %v648
    %678 = vmatprep.subr.mxu0 %v645
    %679 = vmatpush1.msra.mxu0 %v644
    %680 = vmatprep.subr.mxu0 %v641
    %681 = vmatpush1.msra.mxu0 %v640
    %682 = vmatprep.subr.mxu0 %v637
    %683 = vmatpush1.msra.mxu0 %v636
    %684 = vmatprep.subr.mxu0 %v633
    %685 = vmatpush1.msra.mxu0 %v632
    %686 = vmatprep.subr.mxu0 %v629
    %687 = vmatpush1.msra.mxu0 %v628
    %688 = vmatprep.subr.mxu0 %v625
    %689 = vmatpush1.msra.mxu0 %v624
    %690 = vmatprep.subr.mxu0 %v621
    %691 = vmatpush1.msra.mxu0 %v620
    %692 = vmatprep.subr.mxu0 %v617
    %693 = vmatpush1.msra.mxu0 %v616
    %694 = vmatprep.subr.mxu0 %v613
    %695 = vmatpush1.msra.mxu0 %v612
    %696 = vmatprep.subr.mxu0 %v609
    %697 = vmatpush1.msra.mxu0 %v608
    %698 = vmatprep.subr.mxu0 %v605
    %699 = vmatpush1.msra.mxu0 %v604
    %700 = vmatprep.subr.mxu0 0.0
    %701 = vmatpush2.msra.mxu0 0.0
    %702 = vmatprep.subr.mxu0 0.0
    %703 = vmatpush2.msra.mxu0 0.0
    %704 = vmatprep.subr.mxu0 0.0
    %705 = vmatpush2.msra.mxu0 0.0
    %706 = vmatprep.subr.mxu0 0.0
    %707 = vmatpush2.msra.mxu0 0.0
    %708 = vmatprep.subr.mxu0 0.0
    %709 = vmatpush2.msra.mxu0 0.0
    %710 = vmatprep.subr.mxu0 0.0
    %711 = vmatpush2.msra.mxu0 0.0
    %712 = vmatprep.subr.mxu0 0.0
    %713 = vmatpush2.msra.mxu0 0.0
    %714 = vmatprep.subr.mxu0 0.0
    %715 = vmatpush2.msra.mxu0 0.0
    %716 = vmatprep.subr.mxu0 0.0
    %717 = vmatpush2.msra.mxu0 0.0
    %718 = vmatprep.subr.mxu0 0.0
    %719 = vmatpush2.msra.mxu0 0.0
    %720 = vmatprep.subr.mxu0 0.0
    %721 = vmatpush2.msra.mxu0 0.0
    %722 = vmatprep.subr.mxu0 0.0
    %723 = vmatpush2.msra.mxu0 0.0
    %724 = vmatprep.subr.mxu0 0.0
    %725 = vmatpush2.msra.mxu0 0.0
    %726 = vmatprep.subr.mxu0 0.0
    %727 = vmatpush2.msra.mxu0 0.0
    %728 = vmatprep.subr.mxu0 0.0
    %729 = vmatpush2.msra.mxu0 0.0
    %730 = vmatprep.subr.mxu0 0.0
    %731 = vmatpush2.msra.mxu0 0.0
    %732 = vmatprep.mubr.f32.mxu0 0.0
    %733 = vmatmul.mubr.f32.gmra.mxu0 %v595
    %v734 = vpop.f32.mrf.mxu0
    %v735 = vadd.f32 0.0, %v734
    %v736 = vpop.f32.mrf.mxu0
    %v737 = vadd.f32 0.0, %v736
    %738 = vdwg.mxu0
    %739 = vmatprep.subr.mxu0 %v667
    %740 = vmatpush1.msra.mxu0 %v666
    %741 = vmatprep.subr.mxu0 %v663
    %742 = vmatpush1.msra.mxu0 %v662
    %743 = vmatprep.subr.mxu0 %v659
    %744 = vmatpush1.msra.mxu0 %v658
    %745 = vmatprep.subr.mxu0 %v655
    %746 = vmatpush1.msra.mxu0 %v654
    %747 = vmatprep.subr.mxu0 %v651
    %748 = vmatpush1.msra.mxu0 %v650
    %749 = vmatprep.subr.mxu0 %v647
    %750 = vmatpush1.msra.mxu0 %v646
    %751 = vmatprep.subr.mxu0 %v643
    %752 = vmatpush1.msra.mxu0 %v642
    %753 = vmatprep.subr.mxu0 %v639
    %754 = vmatpush1.msra.mxu0 %v638
    %755 = vmatprep.subr.mxu0 %v635
    %756 = vmatpush1.msra.mxu0 %v634
    %757 = vmatprep.subr.mxu0 %v631
    %758 = vmatpush1.msra.mxu0 %v630
    %759 = vmatprep.subr.mxu0 %v627
    %760 = vmatpush1.msra.mxu0 %v626
    %761 = vmatprep.subr.mxu0 %v623
    %762 = vmatpush1.msra.mxu0 %v622
    %763 = vmatprep.subr.mxu0 %v619
    %764 = vmatpush1.msra.mxu0 %v618
    %765 = vmatprep.subr.mxu0 %v615
    %766 = vmatpush1.msra.mxu0 %v614
    %767 = vmatprep.subr.mxu0 %v611
    %768 = vmatpush1.msra.mxu0 %v610
    %769 = vmatprep.subr.mxu0 %v607
    %770 = vmatpush1.msra.mxu0 %v606
    %771 = vmatprep.subr.mxu0 0.0
    %772 = vmatpush2.msra.mxu0 0.0
    %773 = vmatprep.subr.mxu0 0.0
    %774 = vmatpush2.msra.mxu0 0.0
    %775 = vmatprep.subr.mxu0 0.0
    %776 = vmatpush2.msra.mxu0 0.0
    %777 = vmatprep.subr.mxu0 0.0
    %778 = vmatpush2.msra.mxu0 0.0
    %779 = vmatprep.subr.mxu0 0.0
    %780 = vmatpush2.msra.mxu0 0.0
    %781 = vmatprep.subr.mxu0 0.0
    %782 = vmatpush2.msra.mxu0 0.0
    %783 = vmatprep.subr.mxu0 0.0
    %784 = vmatpush2.msra.mxu0 0.0
    %785 = vmatprep.subr.mxu0 0.0
    %786 = vmatpush2.msra.mxu0 0.0
    %787 = vmatprep.subr.mxu0 0.0
    %788 = vmatpush2.msra.mxu0 0.0
    %789 = vmatprep.subr.mxu0 0.0
    %790 = vmatpush2.msra.mxu0 0.0
    %791 = vmatprep.subr.mxu0 0.0
    %792 = vmatpush2.msra.mxu0 0.0
    %793 = vmatprep.subr.mxu0 0.0
    %794 = vmatpush2.msra.mxu0 0.0
    %795 = vmatprep.subr.mxu0 0.0
    %796 = vmatpush2.msra.mxu0 0.0
    %797 = vmatprep.subr.mxu0 0.0
    %798 = vmatpush2.msra.mxu0 0.0
    %799 = vmatprep.subr.mxu0 0.0
    %800 = vmatpush2.msra.mxu0 0.0
    %801 = vmatprep.subr.mxu0 0.0
    %802 = vmatpush2.msra.mxu0 0.0
    %803 = vmatprep.mubr.f32.mxu0 0.0
    %804 = vmatmul.mubr.f32.gmra.mxu0 %v595
    %v805 = vpop.f32.mrf.mxu0
    %v806 = vadd.f32 0.0, %v805
    %v807 = vpop.f32.mrf.mxu0
    %v808 = vadd.f32 0.0, %v807
    %809 = vdwg.mxu0
    %v810 = vadd.f32 %v600, %v735
    %v811 = vadd.f32 %v601, %v737
    %v812 = vadd.f32 %v602, %v806
    %v813 = vadd.f32 %v603, %v808
    %v814 = vxor.u32 %v810, 2147483648
    %v815 = vmul.f32 %v814, 1.442695
    %v816 = vpow.pop %v815
    %v817 = vadd.f32 %v816, 1.0
    %v818 = vrcp.pop %v817
    %v819 = vmul.f32 1.0, %v818
    %v820 = vxor.u32 %v811, 2147483648
    %v821 = vmul.f32 %v820, 1.442695
    %v822 = vpow.pop %v821
    %v823 = vadd.f32 %v822, 1.0
    %v824 = vrcp.pop %v823
    %v825 = vmul.f32 1.0, %v824
    %v826 = vtanh.pop %v812
    %v827 = vxor.u32 %v813, 2147483648
    %v828 = vmul.f32 %v827, 1.442695
    %v829 = vpow.pop %v828
    %v830 = vadd.f32 %v829, 1.0
    %v831 = vrcp.pop %v830
    %v832 = vmul.f32 1.0, %v831
    %v833 = vmul.f32 %v825, %v593
    %v834 = vmul.f32 %v819, %v826
    %v835 = vadd.f32 %v833, %v834
    %v836 = vtanh.pop %v835
    %v837 = vmul.f32 %v832, %v836
    %s838 = scalar_lea.vmem [#allocation8], 8
    %839 = vst [vmem:[%s838] sm:$0xff] %v837
    %s840 = smul.u32 2, 4
    %s841 = smul.addr %s840, 8
    %s842 = scalar_lea.vmem [#allocation2], %s841
    %v843 = vld [vmem:[%s842] sm:$0xff]
    %v844 = vld [vmem:[%s842 + $0x8] sm:$0xff]
    %v845 = vld [vmem:[%s842 + $0x10] sm:$0xff]
    %v846 = vld [vmem:[%s842 + $0x18] sm:$0xff]
    %v847 = vld [vmem:[#allocation6] sm:$0xff]
    %v848 = vld [vmem:[#allocation6 + $0x8] sm:$0xff]
    %v849 = vld [vmem:[#allocation6 + $0x10] sm:$0xff]
    %v850 = vld [vmem:[#allocation6 + $0x18] sm:$0xff]
    %v851 = vld [vmem:[#allocation6 + $0x20] sm:$0xff]
    %v852 = vld [vmem:[#allocation6 + $0x28] sm:$0xff]
    %v853 = vld [vmem:[#allocation6 + $0x30] sm:$0xff]
    %v854 = vld [vmem:[#allocation6 + $0x38] sm:$0xff]
    %v855 = vld [vmem:[#allocation6 + $0x40] sm:$0xff]
    %v856 = vld [vmem:[#allocation6 + $0x48] sm:$0xff]
    %v857 = vld [vmem:[#allocation6 + $0x50] sm:$0xff]
    %v858 = vld [vmem:[#allocation6 + $0x58] sm:$0xff]
    %v859 = vld [vmem:[#allocation6 + $0x60] sm:$0xff]
    %v860 = vld [vmem:[#allocation6 + $0x68] sm:$0xff]
    %v861 = vld [vmem:[#allocation6 + $0x70] sm:$0xff]
    %v862 = vld [vmem:[#allocation6 + $0x78] sm:$0xff]
    %v863 = vld [vmem:[#allocation6 + $0x80] sm:$0xff]
    %v864 = vld [vmem:[#allocation6 + $0x88] sm:$0xff]
    %v865 = vld [vmem:[#allocation6 + $0x90] sm:$0xff]
    %v866 = vld [vmem:[#allocation6 + $0x98] sm:$0xff]
    %v867 = vld [vmem:[#allocation6 + $0xa0] sm:$0xff]
    %v868 = vld [vmem:[#allocation6 + $0xa8] sm:$0xff]
    %v869 = vld [vmem:[#allocation6 + $0xb0] sm:$0xff]
    %v870 = vld [vmem:[#allocation6 + $0xb8] sm:$0xff]
    %v871 = vld [vmem:[#allocation6 + $0xc0] sm:$0xff]
    %v872 = vld [vmem:[#allocation6 + $0xc8] sm:$0xff]
    %v873 = vld [vmem:[#allocation6 + $0xd0] sm:$0xff]
    %v874 = vld [vmem:[#allocation6 + $0xd8] sm:$0xff]
    %v875 = vld [vmem:[#allocation6 + $0xe0] sm:$0xff]
    %v876 = vld [vmem:[#allocation6 + $0xe8] sm:$0xff]
    %v877 = vld [vmem:[#allocation6 + $0xf0] sm:$0xff]
    %v878 = vld [vmem:[#allocation6 + $0xf8] sm:$0xff]
    %v879 = vld [vmem:[#allocation6 + $0x100] sm:$0xff]
    %v880 = vld [vmem:[#allocation6 + $0x108] sm:$0xff]
    %v881 = vld [vmem:[#allocation6 + $0x110] sm:$0xff]
    %v882 = vld [vmem:[#allocation6 + $0x118] sm:$0xff]
    %v883 = vld [vmem:[#allocation6 + $0x120] sm:$0xff]
    %v884 = vld [vmem:[#allocation6 + $0x128] sm:$0xff]
    %v885 = vld [vmem:[#allocation6 + $0x130] sm:$0xff]
    %v886 = vld [vmem:[#allocation6 + $0x138] sm:$0xff]
    %v887 = vld [vmem:[#allocation6 + $0x140] sm:$0xff]
    %v888 = vld [vmem:[#allocation6 + $0x148] sm:$0xff]
    %v889 = vld [vmem:[#allocation6 + $0x150] sm:$0xff]
    %v890 = vld [vmem:[#allocation6 + $0x158] sm:$0xff]
    %v891 = vld [vmem:[#allocation6 + $0x160] sm:$0xff]
    %v892 = vld [vmem:[#allocation6 + $0x168] sm:$0xff]
    %v893 = vld [vmem:[#allocation6 + $0x170] sm:$0xff]
    %v894 = vld [vmem:[#allocation6 + $0x178] sm:$0xff]
    %v895 = vld [vmem:[#allocation6 + $0x180] sm:$0xff]
    %v896 = vld [vmem:[#allocation6 + $0x188] sm:$0xff]
    %v897 = vld [vmem:[#allocation6 + $0x190] sm:$0xff]
    %v898 = vld [vmem:[#allocation6 + $0x198] sm:$0xff]
    %v899 = vld [vmem:[#allocation6 + $0x1a0] sm:$0xff]
    %v900 = vld [vmem:[#allocation6 + $0x1a8] sm:$0xff]
    %v901 = vld [vmem:[#allocation6 + $0x1b0] sm:$0xff]
    %v902 = vld [vmem:[#allocation6 + $0x1b8] sm:$0xff]
    %v903 = vld [vmem:[#allocation6 + $0x1c0] sm:$0xff]
    %v904 = vld [vmem:[#allocation6 + $0x1c8] sm:$0xff]
    %v905 = vld [vmem:[#allocation6 + $0x1d0] sm:$0xff]
    %v906 = vld [vmem:[#allocation6 + $0x1d8] sm:$0xff]
    %v907 = vld [vmem:[#allocation6 + $0x1e0] sm:$0xff]
    %v908 = vld [vmem:[#allocation6 + $0x1e8] sm:$0xff]
    %v909 = vld [vmem:[#allocation6 + $0x1f0] sm:$0xff]
    %v910 = vld [vmem:[#allocation6 + $0x1f8] sm:$0xff]
    %911 = vmatprep.subr.mxu0 %v908
    %912 = vmatpush1.msra.mxu0 %v907
    %913 = vmatprep.subr.mxu0 %v904
    %914 = vmatpush1.msra.mxu0 %v903
    %915 = vmatprep.subr.mxu0 %v900
    %916 = vmatpush1.msra.mxu0 %v899
    %917 = vmatprep.subr.mxu0 %v896
    %918 = vmatpush1.msra.mxu0 %v895
    %919 = vmatprep.subr.mxu0 %v892
    %920 = vmatpush1.msra.mxu0 %v891
    %921 = vmatprep.subr.mxu0 %v888
    %922 = vmatpush1.msra.mxu0 %v887
    %923 = vmatprep.subr.mxu0 %v884
    %924 = vmatpush1.msra.mxu0 %v883
    %925 = vmatprep.subr.mxu0 %v880
    %926 = vmatpush1.msra.mxu0 %v879
    %927 = vmatprep.subr.mxu0 %v876
    %928 = vmatpush1.msra.mxu0 %v875
    %929 = vmatprep.subr.mxu0 %v872
    %930 = vmatpush1.msra.mxu0 %v871
    %931 = vmatprep.subr.mxu0 %v868
    %932 = vmatpush1.msra.mxu0 %v867
    %933 = vmatprep.subr.mxu0 %v864
    %934 = vmatpush1.msra.mxu0 %v863
    %935 = vmatprep.subr.mxu0 %v860
    %936 = vmatpush1.msra.mxu0 %v859
    %937 = vmatprep.subr.mxu0 %v856
    %938 = vmatpush1.msra.mxu0 %v855
    %939 = vmatprep.subr.mxu0 %v852
    %940 = vmatpush1.msra.mxu0 %v851
    %941 = vmatprep.subr.mxu0 %v848
    %942 = vmatpush1.msra.mxu0 %v847
    %943 = vmatprep.subr.mxu0 0.0
    %944 = vmatpush2.msra.mxu0 0.0
    %945 = vmatprep.subr.mxu0 0.0
    %946 = vmatpush2.msra.mxu0 0.0
    %947 = vmatprep.subr.mxu0 0.0
    %948 = vmatpush2.msra.mxu0 0.0
    %949 = vmatprep.subr.mxu0 0.0
    %950 = vmatpush2.msra.mxu0 0.0
    %951 = vmatprep.subr.mxu0 0.0
    %952 = vmatpush2.msra.mxu0 0.0
    %953 = vmatprep.subr.mxu0 0.0
    %954 = vmatpush2.msra.mxu0 0.0
    %955 = vmatprep.subr.mxu0 0.0
    %956 = vmatpush2.msra.mxu0 0.0
    %957 = vmatprep.subr.mxu0 0.0
    %958 = vmatpush2.msra.mxu0 0.0
    %959 = vmatprep.subr.mxu0 0.0
    %960 = vmatpush2.msra.mxu0 0.0
    %961 = vmatprep.subr.mxu0 0.0
    %962 = vmatpush2.msra.mxu0 0.0
    %963 = vmatprep.subr.mxu0 0.0
    %964 = vmatpush2.msra.mxu0 0.0
    %965 = vmatprep.subr.mxu0 0.0
    %966 = vmatpush2.msra.mxu0 0.0
    %967 = vmatprep.subr.mxu0 0.0
    %968 = vmatpush2.msra.mxu0 0.0
    %969 = vmatprep.subr.mxu0 0.0
    %970 = vmatpush2.msra.mxu0 0.0
    %971 = vmatprep.subr.mxu0 0.0
    %972 = vmatpush2.msra.mxu0 0.0
    %973 = vmatprep.subr.mxu0 0.0
    %974 = vmatpush2.msra.mxu0 0.0
    %975 = vmatprep.mubr.f32.mxu0 0.0
    %976 = vmatmul.mubr.f32.gmra.mxu0 %v837
    %v977 = vpop.f32.mrf.mxu0
    %v978 = vadd.f32 0.0, %v977
    %v979 = vpop.f32.mrf.mxu0
    %v980 = vadd.f32 0.0, %v979
    %981 = vdwg.mxu0
    %982 = vmatprep.subr.mxu0 %v910
    %983 = vmatpush1.msra.mxu0 %v909
    %984 = vmatprep.subr.mxu0 %v906
    %985 = vmatpush1.msra.mxu0 %v905
    %986 = vmatprep.subr.mxu0 %v902
    %987 = vmatpush1.msra.mxu0 %v901
    %988 = vmatprep.subr.mxu0 %v898
    %989 = vmatpush1.msra.mxu0 %v897
    %990 = vmatprep.subr.mxu0 %v894
    %991 = vmatpush1.msra.mxu0 %v893
    %992 = vmatprep.subr.mxu0 %v890
    %993 = vmatpush1.msra.mxu0 %v889
    %994 = vmatprep.subr.mxu0 %v886
    %995 = vmatpush1.msra.mxu0 %v885
    %996 = vmatprep.subr.mxu0 %v882
    %997 = vmatpush1.msra.mxu0 %v881
    %998 = vmatprep.subr.mxu0 %v878
    %999 = vmatpush1.msra.mxu0 %v877
    %1000 = vmatprep.subr.mxu0 %v874
    %1001 = vmatpush1.msra.mxu0 %v873
    %1002 = vmatprep.subr.mxu0 %v870
    %1003 = vmatpush1.msra.mxu0 %v869
    %1004 = vmatprep.subr.mxu0 %v866
    %1005 = vmatpush1.msra.mxu0 %v865
    %1006 = vmatprep.subr.mxu0 %v862
    %1007 = vmatpush1.msra.mxu0 %v861
    %1008 = vmatprep.subr.mxu0 %v858
    %1009 = vmatpush1.msra.mxu0 %v857
    %1010 = vmatprep.subr.mxu0 %v854
    %1011 = vmatpush1.msra.mxu0 %v853
    %1012 = vmatprep.subr.mxu0 %v850
    %1013 = vmatpush1.msra.mxu0 %v849
    %1014 = vmatprep.subr.mxu0 0.0
    %1015 = vmatpush2.msra.mxu0 0.0
    %1016 = vmatprep.subr.mxu0 0.0
    %1017 = vmatpush2.msra.mxu0 0.0
    %1018 = vmatprep.subr.mxu0 0.0
    %1019 = vmatpush2.msra.mxu0 0.0
    %1020 = vmatprep.subr.mxu0 0.0
    %1021 = vmatpush2.msra.mxu0 0.0
    %1022 = vmatprep.subr.mxu0 0.0
    %1023 = vmatpush2.msra.mxu0 0.0
    %1024 = vmatprep.subr.mxu0 0.0
    %1025 = vmatpush2.msra.mxu0 0.0
    %1026 = vmatprep.subr.mxu0 0.0
    %1027 = vmatpush2.msra.mxu0 0.0
    %1028 = vmatprep.subr.mxu0 0.0
    %1029 = vmatpush2.msra.mxu0 0.0
    %1030 = vmatprep.subr.mxu0 0.0
    %1031 = vmatpush2.msra.mxu0 0.0
    %1032 = vmatprep.subr.mxu0 0.0
    %1033 = vmatpush2.msra.mxu0 0.0
    %1034 = vmatprep.subr.mxu0 0.0
    %1035 = vmatpush2.msra.mxu0 0.0
    %1036 = vmatprep.subr.mxu0 0.0
    %1037 = vmatpush2.msra.mxu0 0.0
    %1038 = vmatprep.subr.mxu0 0.0
    %1039 = vmatpush2.msra.mxu0 0.0
    %1040 = vmatprep.subr.mxu0 0.0
    %1041 = vmatpush2.msra.mxu0 0.0
    %1042 = vmatprep.subr.mxu0 0.0
    %1043 = vmatpush2.msra.mxu0 0.0
    %1044 = vmatprep.subr.mxu0 0.0
    %1045 = vmatpush2.msra.mxu0 0.0
    %1046 = vmatprep.mubr.f32.mxu0 0.0
    %1047 = vmatmul.mubr.f32.gmra.mxu0 %v837
    %v1048 = vpop.f32.mrf.mxu0
    %v1049 = vadd.f32 0.0, %v1048
    %v1050 = vpop.f32.mrf.mxu0
    %v1051 = vadd.f32 0.0, %v1050
    %1052 = vdwg.mxu0
    %v1053 = vadd.f32 %v843, %v978
    %v1054 = vadd.f32 %v844, %v980
    %v1055 = vadd.f32 %v845, %v1049
    %v1056 = vadd.f32 %v846, %v1051
    %v1057 = vxor.u32 %v1053, 2147483648
    %v1058 = vmul.f32 %v1057, 1.442695
    %v1059 = vpow.pop %v1058
    %v1060 = vadd.f32 %v1059, 1.0
    %v1061 = vrcp.pop %v1060
    %v1062 = vmul.f32 1.0, %v1061
    %v1063 = vxor.u32 %v1054, 2147483648
    %v1064 = vmul.f32 %v1063, 1.442695
    %v1065 = vpow.pop %v1064
    %v1066 = vadd.f32 %v1065, 1.0
    %v1067 = vrcp.pop %v1066
    %v1068 = vmul.f32 1.0, %v1067
    %v1069 = vtanh.pop %v1055
    %v1070 = vxor.u32 %v1056, 2147483648
    %v1071 = vmul.f32 %v1070, 1.442695
    %v1072 = vpow.pop %v1071
    %v1073 = vadd.f32 %v1072, 1.0
    %v1074 = vrcp.pop %v1073
    %v1075 = vmul.f32 1.0, %v1074
    %v1076 = vmul.f32 %v1068, %v835
    %v1077 = vmul.f32 %v1062, %v1069
    %v1078 = vadd.f32 %v1076, %v1077
    %v1079 = vtanh.pop %v1078
    %v1080 = vmul.f32 %v1075, %v1079
    %s1081 = scalar_lea.vmem [#allocation8], 16
    %1082 = vst [vmem:[%s1081] sm:$0xff] %v1080
    %s1083 = smul.u32 3, 4
    %s1084 = smul.addr %s1083, 8
    %s1085 = scalar_lea.vmem [#allocation2], %s1084
    %v1086 = vld [vmem:[%s1085] sm:$0xff]
    %v1087 = vld [vmem:[%s1085 + $0x8] sm:$0xff]
    %v1088 = vld [vmem:[%s1085 + $0x10] sm:$0xff]
    %v1089 = vld [vmem:[%s1085 + $0x18] sm:$0xff]
    %v1090 = vld [vmem:[#allocation6] sm:$0xff]
    %v1091 = vld [vmem:[#allocation6 + $0x8] sm:$0xff]
    %v1092 = vld [vmem:[#allocation6 + $0x10] sm:$0xff]
    %v1093 = vld [vmem:[#allocation6 + $0x18] sm:$0xff]
    %v1094 = vld [vmem:[#allocation6 + $0x20] sm:$0xff]
    %v1095 = vld [vmem:[#allocation6 + $0x28] sm:$0xff]
    %v1096 = vld [vmem:[#allocation6 + $0x30] sm:$0xff]
    %v1097 = vld [vmem:[#allocation6 + $0x38] sm:$0xff]
    %v1098 = vld [vmem:[#allocation6 + $0x40] sm:$0xff]
    %v1099 = vld [vmem:[#allocation6 + $0x48] sm:$0xff]
    %v1100 = vld [vmem:[#allocation6 + $0x50] sm:$0xff]
    %v1101 = vld [vmem:[#allocation6 + $0x58] sm:$0xff]
    %v1102 = vld [vmem:[#allocation6 + $0x60] sm:$0xff]
    %v1103 = vld [vmem:[#allocation6 + $0x68] sm:$0xff]
    %v1104 = vld [vmem:[#allocation6 + $0x70] sm:$0xff]
    %v1105 = vld [vmem:[#allocation6 + $0x78] sm:$0xff]
    %v1106 = vld [vmem:[#allocation6 + $0x80] sm:$0xff]
    %v1107 = vld [vmem:[#allocation6 + $0x88] sm:$0xff]
    %v1108 = vld [vmem:[#allocation6 + $0x90] sm:$0xff]
    %v1109 = vld [vmem:[#allocation6 + $0x98] sm:$0xff]
    %v1110 = vld [vmem:[#allocation6 + $0xa0] sm:$0xff]
    %v1111 = vld [vmem:[#allocation6 + $0xa8] sm:$0xff]
    %v1112 = vld [vmem:[#allocation6 + $0xb0] sm:$0xff]
    %v1113 = vld [vmem:[#allocation6 + $0xb8] sm:$0xff]
    %v1114 = vld [vmem:[#allocation6 + $0xc0] sm:$0xff]
    %v1115 = vld [vmem:[#allocation6 + $0xc8] sm:$0xff]
    %v1116 = vld [vmem:[#allocation6 + $0xd0] sm:$0xff]
    %v1117 = vld [vmem:[#allocation6 + $0xd8] sm:$0xff]
    %v1118 = vld [vmem:[#allocation6 + $0xe0] sm:$0xff]
    %v1119 = vld [vmem:[#allocation6 + $0xe8] sm:$0xff]
    %v1120 = vld [vmem:[#allocation6 + $0xf0] sm:$0xff]
    %v1121 = vld [vmem:[#allocation6 + $0xf8] sm:$0xff]
    %v1122 = vld [vmem:[#allocation6 + $0x100] sm:$0xff]
    %v1123 = vld [vmem:[#allocation6 + $0x108] sm:$0xff]
    %v1124 = vld [vmem:[#allocation6 + $0x110] sm:$0xff]
    %v1125 = vld [vmem:[#allocation6 + $0x118] sm:$0xff]
    %v1126 = vld [vmem:[#allocation6 + $0x120] sm:$0xff]
    %v1127 = vld [vmem:[#allocation6 + $0x128] sm:$0xff]
    %v1128 = vld [vmem:[#allocation6 + $0x130] sm:$0xff]
    %v1129 = vld [vmem:[#allocation6 + $0x138] sm:$0xff]
    %v1130 = vld [vmem:[#allocation6 + $0x140] sm:$0xff]
    %v1131 = vld [vmem:[#allocation6 + $0x148] sm:$0xff]
    %v1132 = vld [vmem:[#allocation6 + $0x150] sm:$0xff]
    %v1133 = vld [vmem:[#allocation6 + $0x158] sm:$0xff]
    %v1134 = vld [vmem:[#allocation6 + $0x160] sm:$0xff]
    %v1135 = vld [vmem:[#allocation6 + $0x168] sm:$0xff]
    %v1136 = vld [vmem:[#allocation6 + $0x170] sm:$0xff]
    %v1137 = vld [vmem:[#allocation6 + $0x178] sm:$0xff]
    %v1138 = vld [vmem:[#allocation6 + $0x180] sm:$0xff]
    %v1139 = vld [vmem:[#allocation6 + $0x188] sm:$0xff]
    %v1140 = vld [vmem:[#allocation6 + $0x190] sm:$0xff]
    %v1141 = vld [vmem:[#allocation6 + $0x198] sm:$0xff]
    %v1142 = vld [vmem:[#allocation6 + $0x1a0] sm:$0xff]
    %v1143 = vld [vmem:[#allocation6 + $0x1a8] sm:$0xff]
    %v1144 = vld [vmem:[#allocation6 + $0x1b0] sm:$0xff]
    %v1145 = vld [vmem:[#allocation6 + $0x1b8] sm:$0xff]
    %v1146 = vld [vmem:[#allocation6 + $0x1c0] sm:$0xff]
    %v1147 = vld [vmem:[#allocation6 + $0x1c8] sm:$0xff]
    %v1148 = vld [vmem:[#allocation6 + $0x1d0] sm:$0xff]
    %v1149 = vld [vmem:[#allocation6 + $0x1d8] sm:$0xff]
    %v1150 = vld [vmem:[#allocation6 + $0x1e0] sm:$0xff]
    %v1151 = vld [vmem:[#allocation6 + $0x1e8] sm:$0xff]
    %v1152 = vld [vmem:[#allocation6 + $0x1f0] sm:$0xff]
    %v1153 = vld [vmem:[#allocation6 + $0x1f8] sm:$0xff]
    %1154 = vmatprep.subr.mxu0 %v1151
    %1155 = vmatpush1.msra.mxu0 %v1150
    %1156 = vmatprep.subr.mxu0 %v1147
    %1157 = vmatpush1.msra.mxu0 %v1146
    %1158 = vmatprep.subr.mxu0 %v1143
    %1159 = vmatpush1.msra.mxu0 %v1142
    %1160 = vmatprep.subr.mxu0 %v1139
    %1161 = vmatpush1.msra.mxu0 %v1138
    %1162 = vmatprep.subr.mxu0 %v1135
    %1163 = vmatpush1.msra.mxu0 %v1134
    %1164 = vmatprep.subr.mxu0 %v1131
    %1165 = vmatpush1.msra.mxu0 %v1130
    %1166 = vmatprep.subr.mxu0 %v1127
    %1167 = vmatpush1.msra.mxu0 %v1126
    %1168 = vmatprep.subr.mxu0 %v1123
    %1169 = vmatpush1.msra.mxu0 %v1122
    %1170 = vmatprep.subr.mxu0 %v1119
    %1171 = vmatpush1.msra.mxu0 %v1118
    %1172 = vmatprep.subr.mxu0 %v1115
    %1173 = vmatpush1.msra.mxu0 %v1114
    %1174 = vmatprep.subr.mxu0 %v1111
    %1175 = vmatpush1.msra.mxu0 %v1110
    %1176 = vmatprep.subr.mxu0 %v1107
    %1177 = vmatpush1.msra.mxu0 %v1106
    %1178 = vmatprep.subr.mxu0 %v1103
    %1179 = vmatpush1.msra.mxu0 %v1102
    %1180 = vmatprep.subr.mxu0 %v1099
    %1181 = vmatpush1.msra.mxu0 %v1098
    %1182 = vmatprep.subr.mxu0 %v1095
    %1183 = vmatpush1.msra.mxu0 %v1094
    %1184 = vmatprep.subr.mxu0 %v1091
    %1185 = vmatpush1.msra.mxu0 %v1090
    %1186 = vmatprep.subr.mxu0 0.0
    %1187 = vmatpush2.msra.mxu0 0.0
    %1188 = vmatprep.subr.mxu0 0.0
    %1189 = vmatpush2.msra.mxu0 0.0
    %1190 = vmatprep.subr.mxu0 0.0
    %1191 = vmatpush2.msra.mxu0 0.0
    %1192 = vmatprep.subr.mxu0 0.0
    %1193 = vmatpush2.msra.mxu0 0.0
    %1194 = vmatprep.subr.mxu0 0.0
    %1195 = vmatpush2.msra.mxu0 0.0
    %1196 = vmatprep.subr.mxu0 0.0
    %1197 = vmatpush2.msra.mxu0 0.0
    %1198 = vmatprep.subr.mxu0 0.0
    %1199 = vmatpush2.msra.mxu0 0.0
    %1200 = vmatprep.subr.mxu0 0.0
    %1201 = vmatpush2.msra.mxu0 0.0
    %1202 = vmatprep.subr.mxu0 0.0
    %1203 = vmatpush2.msra.mxu0 0.0
    %1204 = vmatprep.subr.mxu0 0.0
    %1205 = vmatpush2.msra.mxu0 0.0
    %1206 = vmatprep.subr.mxu0 0.0
    %1207 = vmatpush2.msra.mxu0 0.0
    %1208 = vmatprep.subr.mxu0 0.0
    %1209 = vmatpush2.msra.mxu0 0.0
    %1210 = vmatprep.subr.mxu0 0.0
    %1211 = vmatpush2.msra.mxu0 0.0
    %1212 = vmatprep.subr.mxu0 0.0
    %1213 = vmatpush2.msra.mxu0 0.0
    %1214 = vmatprep.subr.mxu0 0.0
    %1215 = vmatpush2.msra.mxu0 0.0
    %1216 = vmatprep.subr.mxu0 0.0
    %1217 = vmatpush2.msra.mxu0 0.0
    %1218 = vmatprep.mubr.f32.mxu0 0.0
    %1219 = vmatmul.mubr.f32.gmra.mxu0 %v1080
    %v1220 = vpop.f32.mrf.mxu0
    %v1221 = vadd.f32 0.0, %v1220
    %v1222 = vpop.f32.mrf.mxu0
    %v1223 = vadd.f32 0.0, %v1222
    %1224 = vdwg.mxu0
    %1225 = vmatprep.subr.mxu0 %v1153
    %1226 = vmatpush1.msra.mxu0 %v1152
    %1227 = vmatprep.subr.mxu0 %v1149
    %1228 = vmatpush1.msra.mxu0 %v1148
    %1229 = vmatprep.subr.mxu0 %v1145
    %1230 = vmatpush1.msra.mxu0 %v1144
    %1231 = vmatprep.subr.mxu0 %v1141
    %1232 = vmatpush1.msra.mxu0 %v1140
    %1233 = vmatprep.subr.mxu0 %v1137
    %1234 = vmatpush1.msra.mxu0 %v1136
    %1235 = vmatprep.subr.mxu0 %v1133
    %1236 = vmatpush1.msra.mxu0 %v1132
    %1237 = vmatprep.subr.mxu0 %v1129
    %1238 = vmatpush1.msra.mxu0 %v1128
    %1239 = vmatprep.subr.mxu0 %v1125
    %1240 = vmatpush1.msra.mxu0 %v1124
    %1241 = vmatprep.subr.mxu0 %v1121
    %1242 = vmatpush1.msra.mxu0 %v1120
    %1243 = vmatprep.subr.mxu0 %v1117
    %1244 = vmatpush1.msra.mxu0 %v1116
    %1245 = vmatprep.subr.mxu0 %v1113
    %1246 = vmatpush1.msra.mxu0 %v1112
    %1247 = vmatprep.subr.mxu0 %v1109
    %1248 = vmatpush1.msra.mxu0 %v1108
    %1249 = vmatprep.subr.mxu0 %v1105
    %1250 = vmatpush1.msra.mxu0 %v1104
    %1251 = vmatprep.subr.mxu0 %v1101
    %1252 = vmatpush1.msra.mxu0 %v1100
    %1253 = vmatprep.subr.mxu0 %v1097
    %1254 = vmatpush1.msra.mxu0 %v1096
    %1255 = vmatprep.subr.mxu0 %v1093
    %1256 = vmatpush1.msra.mxu0 %v1092
    %1257 = vmatprep.subr.mxu0 0.0
    %1258 = vmatpush2.msra.mxu0 0.0
    %1259 = vmatprep.subr.mxu0 0.0
    %1260 = vmatpush2.msra.mxu0 0.0
    %1261 = vmatprep.subr.mxu0 0.0
    %1262 = vmatpush2.msra.mxu0 0.0
    %1263 = vmatprep.subr.mxu0 0.0
    %1264 = vmatpush2.msra.mxu0 0.0
    %1265 = vmatprep.subr.mxu0 0.0
    %1266 = vmatpush2.msra.mxu0 0.0
    %1267 = vmatprep.subr.mxu0 0.0
    %1268 = vmatpush2.msra.mxu0 0.0
    %1269 = vmatprep.subr.mxu0 0.0
    %1270 = vmatpush2.msra.mxu0 0.0
    %1271 = vmatprep.subr.mxu0 0.0
    %1272 = vmatpush2.msra.mxu0 0.0
    %1273 = vmatprep.subr.mxu0 0.0
    %1274 = vmatpush2.msra.mxu0 0.0
    %1275 = vmatprep.subr.mxu0 0.0
    %1276 = vmatpush2.msra.mxu0 0.0
    %1277 = vmatprep.subr.mxu0 0.0
    %1278 = vmatpush2.msra.mxu0 0.0
    %1279 = vmatprep.subr.mxu0 0.0
    %1280 = vmatpush2.msra.mxu0 0.0
    %1281 = vmatprep.subr.mxu0 0.0
    %1282 = vmatpush2.msra.mxu0 0.0
    %1283 = vmatprep.subr.mxu0 0.0
    %1284 = vmatpush2.msra.mxu0 0.0
    %1285 = vmatprep.subr.mxu0 0.0
    %1286 = vmatpush2.msra.mxu0 0.0
    %1287 = vmatprep.subr.mxu0 0.0
    %1288 = vmatpush2.msra.mxu0 0.0
    %1289 = vmatprep.mubr.f32.mxu0 0.0
    %1290 = vmatmul.mubr.f32.gmra.mxu0 %v1080
    %v1291 = vpop.f32.mrf.mxu0
    %v1292 = vadd.f32 0.0, %v1291
    %v1293 = vpop.f32.mrf.mxu0
    %v1294 = vadd.f32 0.0, %v1293
    %1295 = vdwg.mxu0
    %v1296 = vadd.f32 %v1086, %v1221
    %v1297 = vadd.f32 %v1087, %v1223
    %v1298 = vadd.f32 %v1088, %v1292
    %v1299 = vadd.f32 %v1089, %v1294
    %v1300 = vxor.u32 %v1296, 2147483648
    %v1301 = vmul.f32 %v1300, 1.442695
    %v1302 = vpow.pop %v1301
    %v1303 = vadd.f32 %v1302, 1.0
    %v1304 = vrcp.pop %v1303
    %v1305 = vmul.f32 1.0, %v1304
    %v1306 = vxor.u32 %v1297, 2147483648
    %v1307 = vmul.f32 %v1306, 1.442695
    %v1308 = vpow.pop %v1307
    %v1309 = vadd.f32 %v1308, 1.0
    %v1310 = vrcp.pop %v1309
    %v1311 = vmul.f32 1.0, %v1310
    %v1312 = vtanh.pop %v1298
    %v1313 = vxor.u32 %v1299, 2147483648
    %v1314 = vmul.f32 %v1313, 1.442695
    %v1315 = vpow.pop %v1314
    %v1316 = vadd.f32 %v1315, 1.0
    %v1317 = vrcp.pop %v1316
    %v1318 = vmul.f32 1.0, %v1317
    %v1319 = vmul.f32 %v1311, %v1078
    %v1320 = vmul.f32 %v1305, %v1312
    %v1321 = vadd.f32 %v1319, %v1320
    %v1322 = vtanh.pop %v1321
    %v1323 = vmul.f32 %v1318, %v1322
    %s1324 = scalar_lea.vmem [#allocation8], 24
    %1325 = vst [vmem:[%s1324] sm:$0xff] %v1323
    %s1326 = smul.u32 4, 4
    %s1327 = smul.addr %s1326, 8
    %s1328 = scalar_lea.vmem [#allocation2], %s1327
    %v1329 = vld [vmem:[%s1328] sm:$0xff]
    %v1330 = vld [vmem:[%s1328 + $0x8] sm:$0xff]
    %v1331 = vld [vmem:[%s1328 + $0x10] sm:$0xff]
    %v1332 = vld [vmem:[%s1328 + $0x18] sm:$0xff]
    %v1333 = vld [vmem:[#allocation6] sm:$0xff]
    %v1334 = vld [vmem:[#allocation6 + $0x8] sm:$0xff]
    %v1335 = vld [vmem:[#allocation6 + $0x10] sm:$0xff]
    %v1336 = vld [vmem:[#allocation6 + $0x18] sm:$0xff]
    %v1337 = vld [vmem:[#allocation6 + $0x20] sm:$0xff]
    %v1338 = vld [vmem:[#allocation6 + $0x28] sm:$0xff]
    %v1339 = vld [vmem:[#allocation6 + $0x30] sm:$0xff]
    %v1340 = vld [vmem:[#allocation6 + $0x38] sm:$0xff]
    %v1341 = vld [vmem:[#allocation6 + $0x40] sm:$0xff]
    %v1342 = vld [vmem:[#allocation6 + $0x48] sm:$0xff]
    %v1343 = vld [vmem:[#allocation6 + $0x50] sm:$0xff]
    %v1344 = vld [vmem:[#allocation6 + $0x58] sm:$0xff]
    %v1345 = vld [vmem:[#allocation6 + $0x60] sm:$0xff]
    %v1346 = vld [vmem:[#allocation6 + $0x68] sm:$0xff]
    %v1347 = vld [vmem:[#allocation6 + $0x70] sm:$0xff]
    %v1348 = vld [vmem:[#allocation6 + $0x78] sm:$0xff]
    %v1349 = vld [vmem:[#allocation6 + $0x80] sm:$0xff]
    %v1350 = vld [vmem:[#allocation6 + $0x88] sm:$0xff]
    %v1351 = vld [vmem:[#allocation6 + $0x90] sm:$0xff]
    %v1352 = vld [vmem:[#allocation6 + $0x98] sm:$0xff]
    %v1353 = vld [vmem:[#allocation6 + $0xa0] sm:$0xff]
    %v1354 = vld [vmem:[#allocation6 + $0xa8] sm:$0xff]
    %v1355 = vld [vmem:[#allocation6 + $0xb0] sm:$0xff]
    %v1356 = vld [vmem:[#allocation6 + $0xb8] sm:$0xff]
    %v1357 = vld [vmem:[#allocation6 + $0xc0] sm:$0xff]
    %v1358 = vld [vmem:[#allocation6 + $0xc8] sm:$0xff]
    %v1359 = vld [vmem:[#allocation6 + $0xd0] sm:$0xff]
    %v1360 = vld [vmem:[#allocation6 + $0xd8] sm:$0xff]
    %v1361 = vld [vmem:[#allocation6 + $0xe0] sm:$0xff]
    %v1362 = vld [vmem:[#allocation6 + $0xe8] sm:$0xff]
    %v1363 = vld [vmem:[#allocation6 + $0xf0] sm:$0xff]
    %v1364 = vld [vmem:[#allocation6 + $0xf8] sm:$0xff]
    %v1365 = vld [vmem:[#allocation6 + $0x100] sm:$0xff]
    %v1366 = vld [vmem:[#allocation6 + $0x108] sm:$0xff]
    %v1367 = vld [vmem:[#allocation6 + $0x110] sm:$0xff]
    %v1368 = vld [vmem:[#allocation6 + $0x118] sm:$0xff]
    %v1369 = vld [vmem:[#allocation6 + $0x120] sm:$0xff]
    %v1370 = vld [vmem:[#allocation6 + $0x128] sm:$0xff]
    %v1371 = vld [vmem:[#allocation6 + $0x130] sm:$0xff]
    %v1372 = vld [vmem:[#allocation6 + $0x138] sm:$0xff]
    %v1373 = vld [vmem:[#allocation6 + $0x140] sm:$0xff]
    %v1374 = vld [vmem:[#allocation6 + $0x148] sm:$0xff]
    %v1375 = vld [vmem:[#allocation6 + $0x150] sm:$0xff]
    %v1376 = vld [vmem:[#allocation6 + $0x158] sm:$0xff]
    %v1377 = vld [vmem:[#allocation6 + $0x160] sm:$0xff]
    %v1378 = vld [vmem:[#allocation6 + $0x168] sm:$0xff]
    %v1379 = vld [vmem:[#allocation6 + $0x170] sm:$0xff]
    %v1380 = vld [vmem:[#allocation6 + $0x178] sm:$0xff]
    %v1381 = vld [vmem:[#allocation6 + $0x180] sm:$0xff]
    %v1382 = vld [vmem:[#allocation6 + $0x188] sm:$0xff]
    %v1383 = vld [vmem:[#allocation6 + $0x190] sm:$0xff]
    %v1384 = vld [vmem:[#allocation6 + $0x198] sm:$0xff]
    %v1385 = vld [vmem:[#allocation6 + $0x1a0] sm:$0xff]
    %v1386 = vld [vmem:[#allocation6 + $0x1a8] sm:$0xff]
    %v1387 = vld [vmem:[#allocation6 + $0x1b0] sm:$0xff]
    %v1388 = vld [vmem:[#allocation6 + $0x1b8] sm:$0xff]
    %v1389 = vld [vmem:[#allocation6 + $0x1c0] sm:$0xff]
    %v1390 = vld [vmem:[#allocation6 + $0x1c8] sm:$0xff]
    %v1391 = vld [vmem:[#allocation6 + $0x1d0] sm:$0xff]
    %v1392 = vld [vmem:[#allocation6 + $0x1d8] sm:$0xff]
    %v1393 = vld [vmem:[#allocation6 + $0x1e0] sm:$0xff]
    %v1394 = vld [vmem:[#allocation6 + $0x1e8] sm:$0xff]
    %v1395 = vld [vmem:[#allocation6 + $0x1f0] sm:$0xff]
    %v1396 = vld [vmem:[#allocation6 + $0x1f8] sm:$0xff]
    %1397 = vmatprep.subr.mxu0 %v1394
    %1398 = vmatpush1.msra.mxu0 %v1393
    %1399 = vmatprep.subr.mxu0 %v1390
    %1400 = vmatpush1.msra.mxu0 %v1389
    %1401 = vmatprep.subr.mxu0 %v1386
    %1402 = vmatpush1.msra.mxu0 %v1385
    %1403 = vmatprep.subr.mxu0 %v1382
    %1404 = vmatpush1.msra.mxu0 %v1381
    %1405 = vmatprep.subr.mxu0 %v1378
    %1406 = vmatpush1.msra.mxu0 %v1377
    %1407 = vmatprep.subr.mxu0 %v1374
    %1408 = vmatpush1.msra.mxu0 %v1373
    %1409 = vmatprep.subr.mxu0 %v1370
    %1410 = vmatpush1.msra.mxu0 %v1369
    %1411 = vmatprep.subr.mxu0 %v1366
    %1412 = vmatpush1.msra.mxu0 %v1365
    %1413 = vmatprep.subr.mxu0 %v1362
    %1414 = vmatpush1.msra.mxu0 %v1361
    %1415 = vmatprep.subr.mxu0 %v1358
    %1416 = vmatpush1.msra.mxu0 %v1357
    %1417 = vmatprep.subr.mxu0 %v1354
    %1418 = vmatpush1.msra.mxu0 %v1353
    %1419 = vmatprep.subr.mxu0 %v1350
    %1420 = vmatpush1.msra.mxu0 %v1349
    %1421 = vmatprep.subr.mxu0 %v1346
    %1422 = vmatpush1.msra.mxu0 %v1345
    %1423 = vmatprep.subr.mxu0 %v1342
    %1424 = vmatpush1.msra.mxu0 %v1341
    %1425 = vmatprep.subr.mxu0 %v1338
    %1426 = vmatpush1.msra.mxu0 %v1337
    %1427 = vmatprep.subr.mxu0 %v1334
    %1428 = vmatpush1.msra.mxu0 %v1333
    %1429 = vmatprep.subr.mxu0 0.0
    %1430 = vmatpush2.msra.mxu0 0.0
    %1431 = vmatprep.subr.mxu0 0.0
    %1432 = vmatpush2.msra.mxu0 0.0
    %1433 = vmatprep.subr.mxu0 0.0
    %1434 = vmatpush2.msra.mxu0 0.0
    %1435 = vmatprep.subr.mxu0 0.0
    %1436 = vmatpush2.msra.mxu0 0.0
    %1437 = vmatprep.subr.mxu0 0.0
    %1438 = vmatpush2.msra.mxu0 0.0
    %1439 = vmatprep.subr.mxu0 0.0
    %1440 = vmatpush2.msra.mxu0 0.0
    %1441 = vmatprep.subr.mxu0 0.0
    %1442 = vmatpush2.msra.mxu0 0.0
    %1443 = vmatprep.subr.mxu0 0.0
    %1444 = vmatpush2.msra.mxu0 0.0
    %1445 = vmatprep.subr.mxu0 0.0
    %1446 = vmatpush2.msra.mxu0 0.0
    %1447 = vmatprep.subr.mxu0 0.0
    %1448 = vmatpush2.msra.mxu0 0.0
    %1449 = vmatprep.subr.mxu0 0.0
    %1450 = vmatpush2.msra.mxu0 0.0
    %1451 = vmatprep.subr.mxu0 0.0
    %1452 = vmatpush2.msra.mxu0 0.0
    %1453 = vmatprep.subr.mxu0 0.0
    %1454 = vmatpush2.msra.mxu0 0.0
    %1455 = vmatprep.subr.mxu0 0.0
    %1456 = vmatpush2.msra.mxu0 0.0
    %1457 = vmatprep.subr.mxu0 0.0
    %1458 = vmatpush2.msra.mxu0 0.0
    %1459 = vmatprep.subr.mxu0 0.0
    %1460 = vmatpush2.msra.mxu0 0.0
    %1461 = vmatprep.mubr.f32.mxu0 0.0
    %1462 = vmatmul.mubr.f32.gmra.mxu0 %v1323
    %v1463 = vpop.f32.mrf.mxu0
    %v1464 = vadd.f32 0.0, %v1463
    %v1465 = vpop.f32.mrf.mxu0
    %v1466 = vadd.f32 0.0, %v1465
    %1467 = vdwg.mxu0
    %1468 = vmatprep.subr.mxu0 %v1396
    %1469 = vmatpush1.msra.mxu0 %v1395
    %1470 = vmatprep.subr.mxu0 %v1392
    %1471 = vmatpush1.msra.mxu0 %v1391
    %1472 = vmatprep.subr.mxu0 %v1388
    %1473 = vmatpush1.msra.mxu0 %v1387
    %1474 = vmatprep.subr.mxu0 %v1384
    %1475 = vmatpush1.msra.mxu0 %v1383
    %1476 = vmatprep.subr.mxu0 %v1380
    %1477 = vmatpush1.msra.mxu0 %v1379
    %1478 = vmatprep.subr.mxu0 %v1376
    %1479 = vmatpush1.msra.mxu0 %v1375
    %1480 = vmatprep.subr.mxu0 %v1372
    %1481 = vmatpush1.msra.mxu0 %v1371
    %1482 = vmatprep.subr.mxu0 %v1368
    %1483 = vmatpush1.msra.mxu0 %v1367
    %1484 = vmatprep.subr.mxu0 %v1364
    %1485 = vmatpush1.msra.mxu0 %v1363
    %1486 = vmatprep.subr.mxu0 %v1360
    %1487 = vmatpush1.msra.mxu0 %v1359
    %1488 = vmatprep.subr.mxu0 %v1356
    %1489 = vmatpush1.msra.mxu0 %v1355
    %1490 = vmatprep.subr.mxu0 %v1352
    %1491 = vmatpush1.msra.mxu0 %v1351
    %1492 = vmatprep.subr.mxu0 %v1348
    %1493 = vmatpush1.msra.mxu0 %v1347
    %1494 = vmatprep.subr.mxu0 %v1344
    %1495 = vmatpush1.msra.mxu0 %v1343
    %1496 = vmatprep.subr.mxu0 %v1340
    %1497 = vmatpush1.msra.mxu0 %v1339
    %1498 = vmatprep.subr.mxu0 %v1336
    %1499 = vmatpush1.msra.mxu0 %v1335
    %1500 = vmatprep.subr.mxu0 0.0
    %1501 = vmatpush2.msra.mxu0 0.0
    %1502 = vmatprep.subr.mxu0 0.0
    %1503 = vmatpush2.msra.mxu0 0.0
    %1504 = vmatprep.subr.mxu0 0.0
    %1505 = vmatpush2.msra.mxu0 0.0
    %1506 = vmatprep.subr.mxu0 0.0
    %1507 = vmatpush2.msra.mxu0 0.0
    %1508 = vmatprep.subr.mxu0 0.0
    %1509 = vmatpush2.msra.mxu0 0.0
    %1510 = vmatprep.subr.mxu0 0.0
    %1511 = vmatpush2.msra.mxu0 0.0
    %1512 = vmatprep.subr.mxu0 0.0
    %1513 = vmatpush2.msra.mxu0 0.0
    %1514 = vmatprep.subr.mxu0 0.0
    %1515 = vmatpush2.msra.mxu0 0.0
    %1516 = vmatprep.subr.mxu0 0.0
    %1517 = vmatpush2.msra.mxu0 0.0
    %1518 = vmatprep.subr.mxu0 0.0
    %1519 = vmatpush2.msra.mxu0 0.0
    %1520 = vmatprep.subr.mxu0 0.0
    %1521 = vmatpush2.msra.mxu0 0.0
    %1522 = vmatprep.subr.mxu0 0.0
    %1523 = vmatpush2.msra.mxu0 0.0
    %1524 = vmatprep.subr.mxu0 0.0
    %1525 = vmatpush2.msra.mxu0 0.0
    %1526 = vmatprep.subr.mxu0 0.0
    %1527 = vmatpush2.msra.mxu0 0.0
    %1528 = vmatprep.subr.mxu0 0.0
    %1529 = vmatpush2.msra.mxu0 0.0
    %1530 = vmatprep.subr.mxu0 0.0
    %1531 = vmatpush2.msra.mxu0 0.0
    %1532 = vmatprep.mubr.f32.mxu0 0.0
    %1533 = vmatmul.mubr.f32.gmra.mxu0 %v1323
    %v1534 = vpop.f32.mrf.mxu0
    %v1535 = vadd.f32 0.0, %v1534
    %v1536 = vpop.f32.mrf.mxu0
    %v1537 = vadd.f32 0.0, %v1536
    %1538 = vdwg.mxu0
    %v1539 = vadd.f32 %v1329, %v1464
    %v1540 = vadd.f32 %v1330, %v1466
    %v1541 = vadd.f32 %v1331, %v1535
    %v1542 = vadd.f32 %v1332, %v1537
    %v1543 = vxor.u32 %v1539, 2147483648
    %v1544 = vmul.f32 %v1543, 1.442695
    %v1545 = vpow.pop %v1544
    %v1546 = vadd.f32 %v1545, 1.0
    %v1547 = vrcp.pop %v1546
    %v1548 = vmul.f32 1.0, %v1547
    %v1549 = vxor.u32 %v1540, 2147483648
    %v1550 = vmul.f32 %v1549, 1.442695
    %v1551 = vpow.pop %v1550
    %v1552 = vadd.f32 %v1551, 1.0
    %v1553 = vrcp.pop %v1552
    %v1554 = vmul.f32 1.0, %v1553
    %v1555 = vtanh.pop %v1541
    %v1556 = vxor.u32 %v1542, 2147483648
    %v1557 = vmul.f32 %v1556, 1.442695
    %v1558 = vpow.pop %v1557
    %v1559 = vadd.f32 %v1558, 1.0
    %v1560 = vrcp.pop %v1559
    %v1561 = vmul.f32 1.0, %v1560
    %v1562 = vmul.f32 %v1554, %v1321
    %v1563 = vmul.f32 %v1548, %v1555
    %v1564 = vadd.f32 %v1562, %v1563
    %v1565 = vtanh.pop %v1564
    %v1566 = vmul.f32 %v1561, %v1565
    %s1567 = scalar_lea.vmem [#allocation8], 32
    %1568 = vst [vmem:[%s1567] sm:$0xff] %v1566
    %s1569 = smul.u32 5, 4
    %s1570 = smul.addr %s1569, 8
    %s1571 = scalar_lea.vmem [#allocation2], %s1570
    %v1572 = vld [vmem:[%s1571] sm:$0xff]
    %v1573 = vld [vmem:[%s1571 + $0x8] sm:$0xff]
    %v1574 = vld [vmem:[%s1571 + $0x10] sm:$0xff]
    %v1575 = vld [vmem:[%s1571 + $0x18] sm:$0xff]
    %v1576 = vld [vmem:[#allocation6] sm:$0xff]
    %v1577 = vld [vmem:[#allocation6 + $0x8] sm:$0xff]
    %v1578 = vld [vmem:[#allocation6 + $0x10] sm:$0xff]
    %v1579 = vld [vmem:[#allocation6 + $0x18] sm:$0xff]
    %v1580 = vld [vmem:[#allocation6 + $0x20] sm:$0xff]
    %v1581 = vld [vmem:[#allocation6 + $0x28] sm:$0xff]
    %v1582 = vld [vmem:[#allocation6 + $0x30] sm:$0xff]
    %v1583 = vld [vmem:[#allocation6 + $0x38] sm:$0xff]
    %v1584 = vld [vmem:[#allocation6 + $0x40] sm:$0xff]
    %v1585 = vld [vmem:[#allocation6 + $0x48] sm:$0xff]
    %v1586 = vld [vmem:[#allocation6 + $0x50] sm:$0xff]
    %v1587 = vld [vmem:[#allocation6 + $0x58] sm:$0xff]
    %v1588 = vld [vmem:[#allocation6 + $0x60] sm:$0xff]
    %v1589 = vld [vmem:[#allocation6 + $0x68] sm:$0xff]
    %v1590 = vld [vmem:[#allocation6 + $0x70] sm:$0xff]
    %v1591 = vld [vmem:[#allocation6 + $0x78] sm:$0xff]
    %v1592 = vld [vmem:[#allocation6 + $0x80] sm:$0xff]
    %v1593 = vld [vmem:[#allocation6 + $0x88] sm:$0xff]
    %v1594 = vld [vmem:[#allocation6 + $0x90] sm:$0xff]
    %v1595 = vld [vmem:[#allocation6 + $0x98] sm:$0xff]
    %v1596 = vld [vmem:[#allocation6 + $0xa0] sm:$0xff]
    %v1597 = vld [vmem:[#allocation6 + $0xa8] sm:$0xff]
    %v1598 = vld [vmem:[#allocation6 + $0xb0] sm:$0xff]
    %v1599 = vld [vmem:[#allocation6 + $0xb8] sm:$0xff]
    %v1600 = vld [vmem:[#allocation6 + $0xc0] sm:$0xff]
    %v1601 = vld [vmem:[#allocation6 + $0xc8] sm:$0xff]
    %v1602 = vld [vmem:[#allocation6 + $0xd0] sm:$0xff]
    %v1603 = vld [vmem:[#allocation6 + $0xd8] sm:$0xff]
    %v1604 = vld [vmem:[#allocation6 + $0xe0] sm:$0xff]
    %v1605 = vld [vmem:[#allocation6 + $0xe8] sm:$0xff]
    %v1606 = vld [vmem:[#allocation6 + $0xf0] sm:$0xff]
    %v1607 = vld [vmem:[#allocation6 + $0xf8] sm:$0xff]
    %v1608 = vld [vmem:[#allocation6 + $0x100] sm:$0xff]
    %v1609 = vld [vmem:[#allocation6 + $0x108] sm:$0xff]
    %v1610 = vld [vmem:[#allocation6 + $0x110] sm:$0xff]
    %v1611 = vld [vmem:[#allocation6 + $0x118] sm:$0xff]
    %v1612 = vld [vmem:[#allocation6 + $0x120] sm:$0xff]
    %v1613 = vld [vmem:[#allocation6 + $0x128] sm:$0xff]
    %v1614 = vld [vmem:[#allocation6 + $0x130] sm:$0xff]
    %v1615 = vld [vmem:[#allocation6 + $0x138] sm:$0xff]
    %v1616 = vld [vmem:[#allocation6 + $0x140] sm:$0xff]
    %v1617 = vld [vmem:[#allocation6 + $0x148] sm:$0xff]
    %v1618 = vld [vmem:[#allocation6 + $0x150] sm:$0xff]
    %v1619 = vld [vmem:[#allocation6 + $0x158] sm:$0xff]
    %v1620 = vld [vmem:[#allocation6 + $0x160] sm:$0xff]
    %v1621 = vld [vmem:[#allocation6 + $0x168] sm:$0xff]
    %v1622 = vld [vmem:[#allocation6 + $0x170] sm:$0xff]
    %v1623 = vld [vmem:[#allocation6 + $0x178] sm:$0xff]
    %v1624 = vld [vmem:[#allocation6 + $0x180] sm:$0xff]
    %v1625 = vld [vmem:[#allocation6 + $0x188] sm:$0xff]
    %v1626 = vld [vmem:[#allocation6 + $0x190] sm:$0xff]
    %v1627 = vld [vmem:[#allocation6 + $0x198] sm:$0xff]
    %v1628 = vld [vmem:[#allocation6 + $0x1a0] sm:$0xff]
    %v1629 = vld [vmem:[#allocation6 + $0x1a8] sm:$0xff]
    %v1630 = vld [vmem:[#allocation6 + $0x1b0] sm:$0xff]
    %v1631 = vld [vmem:[#allocation6 + $0x1b8] sm:$0xff]
    %v1632 = vld [vmem:[#allocation6 + $0x1c0] sm:$0xff]
    %v1633 = vld [vmem:[#allocation6 + $0x1c8] sm:$0xff]
    %v1634 = vld [vmem:[#allocation6 + $0x1d0] sm:$0xff]
    %v1635 = vld [vmem:[#allocation6 + $0x1d8] sm:$0xff]
    %v1636 = vld [vmem:[#allocation6 + $0x1e0] sm:$0xff]
    %v1637 = vld [vmem:[#allocation6 + $0x1e8] sm:$0xff]
    %v1638 = vld [vmem:[#allocation6 + $0x1f0] sm:$0xff]
    %v1639 = vld [vmem:[#allocation6 + $0x1f8] sm:$0xff]
    %1640 = vmatprep.subr.mxu0 %v1637
    %1641 = vmatpush1.msra.mxu0 %v1636
    %1642 = vmatprep.subr.mxu0 %v1633
    %1643 = vmatpush1.msra.mxu0 %v1632
    %1644 = vmatprep.subr.mxu0 %v1629
    %1645 = vmatpush1.msra.mxu0 %v1628
    %1646 = vmatprep.subr.mxu0 %v1625
    %1647 = vmatpush1.msra.mxu0 %v1624
    %1648 = vmatprep.subr.mxu0 %v1621
    %1649 = vmatpush1.msra.mxu0 %v1620
    %1650 = vmatprep.subr.mxu0 %v1617
    %1651 = vmatpush1.msra.mxu0 %v1616
    %1652 = vmatprep.subr.mxu0 %v1613
    %1653 = vmatpush1.msra.mxu0 %v1612
    %1654 = vmatprep.subr.mxu0 %v1609
    %1655 = vmatpush1.msra.mxu0 %v1608
    %1656 = vmatprep.subr.mxu0 %v1605
    %1657 = vmatpush1.msra.mxu0 %v1604
    %1658 = vmatprep.subr.mxu0 %v1601
    %1659 = vmatpush1.msra.mxu0 %v1600
    %1660 = vmatprep.subr.mxu0 %v1597
    %1661 = vmatpush1.msra.mxu0 %v1596
    %1662 = vmatprep.subr.mxu0 %v1593
    %1663 = vmatpush1.msra.mxu0 %v1592
    %1664 = vmatprep.subr.mxu0 %v1589
    %1665 = vmatpush1.msra.mxu0 %v1588
    %1666 = vmatprep.subr.mxu0 %v1585
    %1667 = vmatpush1.msra.mxu0 %v1584
    %1668 = vmatprep.subr.mxu0 %v1581
    %1669 = vmatpush1.msra.mxu0 %v1580
    %1670 = vmatprep.subr.mxu0 %v1577
    %1671 = vmatpush1.msra.mxu0 %v1576
    %1672 = vmatprep.subr.mxu0 0.0
    %1673 = vmatpush2.msra.mxu0 0.0
    %1674 = vmatprep.subr.mxu0 0.0
    %1675 = vmatpush2.msra.mxu0 0.0
    %1676 = vmatprep.subr.mxu0 0.0
    %1677 = vmatpush2.msra.mxu0 0.0
    %1678 = vmatprep.subr.mxu0 0.0
    %1679 = vmatpush2.msra.mxu0 0.0
    %1680 = vmatprep.subr.mxu0 0.0
    %1681 = vmatpush2.msra.mxu0 0.0
    %1682 = vmatprep.subr.mxu0 0.0
    %1683 = vmatpush2.msra.mxu0 0.0
    %1684 = vmatprep.subr.mxu0 0.0
    %1685 = vmatpush2.msra.mxu0 0.0
    %1686 = vmatprep.subr.mxu0 0.0
    %1687 = vmatpush2.msra.mxu0 0.0
    %1688 = vmatprep.subr.mxu0 0.0
    %1689 = vmatpush2.msra.mxu0 0.0
    %1690 = vmatprep.subr.mxu0 0.0
    %1691 = vmatpush2.msra.mxu0 0.0
    %1692 = vmatprep.subr.mxu0 0.0
    %1693 = vmatpush2.msra.mxu0 0.0
    %1694 = vmatprep.subr.mxu0 0.0
    %1695 = vmatpush2.msra.mxu0 0.0
    %1696 = vmatprep.subr.mxu0 0.0
    %1697 = vmatpush2.msra.mxu0 0.0
    %1698 = vmatprep.subr.mxu0 0.0
    %1699 = vmatpush2.msra.mxu0 0.0
    %1700 = vmatprep.subr.mxu0 0.0
    %1701 = vmatpush2.msra.mxu0 0.0
    %1702 = vmatprep.subr.mxu0 0.0
    %1703 = vmatpush2.msra.mxu0 0.0
    %1704 = vmatprep.mubr.f32.mxu0 0.0
    %1705 = vmatmul.mubr.f32.gmra.mxu0 %v1566
    %v1706 = vpop.f32.mrf.mxu0
    %v1707 = vadd.f32 0.0, %v1706
    %v1708 = vpop.f32.mrf.mxu0
    %v1709 = vadd.f32 0.0, %v1708
    %1710 = vdwg.mxu0
    %1711 = vmatprep.subr.mxu0 %v1639
    %1712 = vmatpush1.msra.mxu0 %v1638
    %1713 = vmatprep.subr.mxu0 %v1635
    %1714 = vmatpush1.msra.mxu0 %v1634
    %1715 = vmatprep.subr.mxu0 %v1631
    %1716 = vmatpush1.msra.mxu0 %v1630
    %1717 = vmatprep.subr.mxu0 %v1627
    %1718 = vmatpush1.msra.mxu0 %v1626
    %1719 = vmatprep.subr.mxu0 %v1623
    %1720 = vmatpush1.msra.mxu0 %v1622
    %1721 = vmatprep.subr.mxu0 %v1619
    %1722 = vmatpush1.msra.mxu0 %v1618
    %1723 = vmatprep.subr.mxu0 %v1615
    %1724 = vmatpush1.msra.mxu0 %v1614
    %1725 = vmatprep.subr.mxu0 %v1611
    %1726 = vmatpush1.msra.mxu0 %v1610
    %1727 = vmatprep.subr.mxu0 %v1607
    %1728 = vmatpush1.msra.mxu0 %v1606
    %1729 = vmatprep.subr.mxu0 %v1603
    %1730 = vmatpush1.msra.mxu0 %v1602
    %1731 = vmatprep.subr.mxu0 %v1599
    %1732 = vmatpush1.msra.mxu0 %v1598
    %1733 = vmatprep.subr.mxu0 %v1595
    %1734 = vmatpush1.msra.mxu0 %v1594
    %1735 = vmatprep.subr.mxu0 %v1591
    %1736 = vmatpush1.msra.mxu0 %v1590
    %1737 = vmatprep.subr.mxu0 %v1587
    %1738 = vmatpush1.msra.mxu0 %v1586
    %1739 = vmatprep.subr.mxu0 %v1583
    %1740 = vmatpush1.msra.mxu0 %v1582
    %1741 = vmatprep.subr.mxu0 %v1579
    %1742 = vmatpush1.msra.mxu0 %v1578
    %1743 = vmatprep.subr.mxu0 0.0
    %1744 = vmatpush2.msra.mxu0 0.0
    %1745 = vmatprep.subr.mxu0 0.0
    %1746 = vmatpush2.msra.mxu0 0.0
    %1747 = vmatprep.subr.mxu0 0.0
    %1748 = vmatpush2.msra.mxu0 0.0
    %1749 = vmatprep.subr.mxu0 0.0
    %1750 = vmatpush2.msra.mxu0 0.0
    %1751 = vmatprep.subr.mxu0 0.0
    %1752 = vmatpush2.msra.mxu0 0.0
    %1753 = vmatprep.subr.mxu0 0.0
    %1754 = vmatpush2.msra.mxu0 0.0
    %1755 = vmatprep.subr.mxu0 0.0
    %1756 = vmatpush2.msra.mxu0 0.0
    %1757 = vmatprep.subr.mxu0 0.0
    %1758 = vmatpush2.msra.mxu0 0.0
    %1759 = vmatprep.subr.mxu0 0.0
    %1760 = vmatpush2.msra.mxu0 0.0
    %1761 = vmatprep.subr.mxu0 0.0
    %1762 = vmatpush2.msra.mxu0 0.0
    %1763 = vmatprep.subr.mxu0 0.0
    %1764 = vmatpush2.msra.mxu0 0.0
    %1765 = vmatprep.subr.mxu0 0.0
    %1766 = vmatpush2.msra.mxu0 0.0
    %1767 = vmatprep.subr.mxu0 0.0
    %1768 = vmatpush2.msra.mxu0 0.0
    %1769 = vmatprep.subr.mxu0 0.0
    %1770 = vmatpush2.msra.mxu0 0.0
    %1771 = vmatprep.subr.mxu0 0.0
    %1772 = vmatpush2.msra.mxu0 0.0
    %1773 = vmatprep.subr.mxu0 0.0
    %1774 = vmatpush2.msra.mxu0 0.0
    %1775 = vmatprep.mubr.f32.mxu0 0.0
    %1776 = vmatmul.mubr.f32.gmra.mxu0 %v1566
    %v1777 = vpop.f32.mrf.mxu0
    %v1778 = vadd.f32 0.0, %v1777
    %v1779 = vpop.f32.mrf.mxu0
    %v1780 = vadd.f32 0.0, %v1779
    %1781 = vdwg.mxu0
    %v1782 = vadd.f32 %v1572, %v1707
    %v1783 = vadd.f32 %v1573, %v1709
    %v1784 = vadd.f32 %v1574, %v1778
    %v1785 = vadd.f32 %v1575, %v1780
    %v1786 = vxor.u32 %v1782, 2147483648
    %v1787 = vmul.f32 %v1786, 1.442695
    %v1788 = vpow.pop %v1787
    %v1789 = vadd.f32 %v1788, 1.0
    %v1790 = vrcp.pop %v1789
    %v1791 = vmul.f32 1.0, %v1790
    %v1792 = vxor.u32 %v1783, 2147483648
    %v1793 = vmul.f32 %v1792, 1.442695
    %v1794 = vpow.pop %v1793
    %v1795 = vadd.f32 %v1794, 1.0
    %v1796 = vrcp.pop %v1795
    %v1797 = vmul.f32 1.0, %v1796
    %v1798 = vtanh.pop %v1784
    %v1799 = vxor.u32 %v1785, 2147483648
    %v1800 = vmul.f32 %v1799, 1.442695
    %v1801 = vpow.pop %v1800
    %v1802 = vadd.f32 %v1801, 1.0
    %v1803 = vrcp.pop %v1802
    %v1804 = vmul.f32 1.0, %v1803
    %v1805 = vmul.f32 %v1797, %v1564
    %v1806 = vmul.f32 %v1791, %v1798
    %v1807 = vadd.f32 %v1805, %v1806
    %v1808 = vtanh.pop %v1807
    %v1809 = vmul.f32 %v1804, %v1808
    %s1810 = scalar_lea.vmem [#allocation8], 40
    %1811 = vst [vmem:[%s1810] sm:$0xff] %v1809
    %s1812 = smul.u32 6, 4
    %s1813 = smul.addr %s1812, 8
    %s1814 = scalar_lea.vmem [#allocation2], %s1813
    %v1815 = vld [vmem:[%s1814] sm:$0xff]
    %v1816 = vld [vmem:[%s1814 + $0x8] sm:$0xff]
    %v1817 = vld [vmem:[%s1814 + $0x10] sm:$0xff]
    %v1818 = vld [vmem:[%s1814 + $0x18] sm:$0xff]
    %v1819 = vld [vmem:[#allocation6] sm:$0xff]
    %v1820 = vld [vmem:[#allocation6 + $0x8] sm:$0xff]
    %v1821 = vld [vmem:[#allocation6 + $0x10] sm:$0xff]
    %v1822 = vld [vmem:[#allocation6 + $0x18] sm:$0xff]
    %v1823 = vld [vmem:[#allocation6 + $0x20] sm:$0xff]
    %v1824 = vld [vmem:[#allocation6 + $0x28] sm:$0xff]
    %v1825 = vld [vmem:[#allocation6 + $0x30] sm:$0xff]
    %v1826 = vld [vmem:[#allocation6 + $0x38] sm:$0xff]
    %v1827 = vld [vmem:[#allocation6 + $0x40] sm:$0xff]
    %v1828 = vld [vmem:[#allocation6 + $0x48] sm:$0xff]
    %v1829 = vld [vmem:[#allocation6 + $0x50] sm:$0xff]
    %v1830 = vld [vmem:[#allocation6 + $0x58] sm:$0xff]
    %v1831 = vld [vmem:[#allocation6 + $0x60] sm:$0xff]
    %v1832 = vld [vmem:[#allocation6 + $0x68] sm:$0xff]
    %v1833 = vld [vmem:[#allocation6 + $0x70] sm:$0xff]
    %v1834 = vld [vmem:[#allocation6 + $0x78] sm:$0xff]
    %v1835 = vld [vmem:[#allocation6 + $0x80] sm:$0xff]
    %v1836 = vld [vmem:[#allocation6 + $0x88] sm:$0xff]
    %v1837 = vld [vmem:[#allocation6 + $0x90] sm:$0xff]
    %v1838 = vld [vmem:[#allocation6 + $0x98] sm:$0xff]
    %v1839 = vld [vmem:[#allocation6 + $0xa0] sm:$0xff]
    %v1840 = vld [vmem:[#allocation6 + $0xa8] sm:$0xff]
    %v1841 = vld [vmem:[#allocation6 + $0xb0] sm:$0xff]
    %v1842 = vld [vmem:[#allocation6 + $0xb8] sm:$0xff]
    %v1843 = vld [vmem:[#allocation6 + $0xc0] sm:$0xff]
    %v1844 = vld [vmem:[#allocation6 + $0xc8] sm:$0xff]
    %v1845 = vld [vmem:[#allocation6 + $0xd0] sm:$0xff]
    %v1846 = vld [vmem:[#allocation6 + $0xd8] sm:$0xff]
    %v1847 = vld [vmem:[#allocation6 + $0xe0] sm:$0xff]
    %v1848 = vld [vmem:[#allocation6 + $0xe8] sm:$0xff]
    %v1849 = vld [vmem:[#allocation6 + $0xf0] sm:$0xff]
    %v1850 = vld [vmem:[#allocation6 + $0xf8] sm:$0xff]
    %v1851 = vld [vmem:[#allocation6 + $0x100] sm:$0xff]
    %v1852 = vld [vmem:[#allocation6 + $0x108] sm:$0xff]
    %v1853 = vld [vmem:[#allocation6 + $0x110] sm:$0xff]
    %v1854 = vld [vmem:[#allocation6 + $0x118] sm:$0xff]
    %v1855 = vld [vmem:[#allocation6 + $0x120] sm:$0xff]
    %v1856 = vld [vmem:[#allocation6 + $0x128] sm:$0xff]
    %v1857 = vld [vmem:[#allocation6 + $0x130] sm:$0xff]
    %v1858 = vld [vmem:[#allocation6 + $0x138] sm:$0xff]
    %v1859 = vld [vmem:[#allocation6 + $0x140] sm:$0xff]
    %v1860 = vld [vmem:[#allocation6 + $0x148] sm:$0xff]
    %v1861 = vld [vmem:[#allocation6 + $0x150] sm:$0xff]
    %v1862 = vld [vmem:[#allocation6 + $0x158] sm:$0xff]
    %v1863 = vld [vmem:[#allocation6 + $0x160] sm:$0xff]
    %v1864 = vld [vmem:[#allocation6 + $0x168] sm:$0xff]
    %v1865 = vld [vmem:[#allocation6 + $0x170] sm:$0xff]
    %v1866 = vld [vmem:[#allocation6 + $0x178] sm:$0xff]
    %v1867 = vld [vmem:[#allocation6 + $0x180] sm:$0xff]
    %v1868 = vld [vmem:[#allocation6 + $0x188] sm:$0xff]
    %v1869 = vld [vmem:[#allocation6 + $0x190] sm:$0xff]
    %v1870 = vld [vmem:[#allocation6 + $0x198] sm:$0xff]
    %v1871 = vld [vmem:[#allocation6 + $0x1a0] sm:$0xff]
    %v1872 = vld [vmem:[#allocation6 + $0x1a8] sm:$0xff]
    %v1873 = vld [vmem:[#allocation6 + $0x1b0] sm:$0xff]
    %v1874 = vld [vmem:[#allocation6 + $0x1b8] sm:$0xff]
    %v1875 = vld [vmem:[#allocation6 + $0x1c0] sm:$0xff]
    %v1876 = vld [vmem:[#allocation6 + $0x1c8] sm:$0xff]
    %v1877 = vld [vmem:[#allocation6 + $0x1d0] sm:$0xff]
    %v1878 = vld [vmem:[#allocation6 + $0x1d8] sm:$0xff]
    %v1879 = vld [vmem:[#allocation6 + $0x1e0] sm:$0xff]
    %v1880 = vld [vmem:[#allocation6 + $0x1e8] sm:$0xff]
    %v1881 = vld [vmem:[#allocation6 + $0x1f0] sm:$0xff]
    %v1882 = vld [vmem:[#allocation6 + $0x1f8] sm:$0xff]
    %1883 = vmatprep.subr.mxu0 %v1880
    %1884 = vmatpush1.msra.mxu0 %v1879
    %1885 = vmatprep.subr.mxu0 %v1876
    %1886 = vmatpush1.msra.mxu0 %v1875
    %1887 = vmatprep.subr.mxu0 %v1872
    %1888 = vmatpush1.msra.mxu0 %v1871
    %1889 = vmatprep.subr.mxu0 %v1868
    %1890 = vmatpush1.msra.mxu0 %v1867
    %1891 = vmatprep.subr.mxu0 %v1864
    %1892 = vmatpush1.msra.mxu0 %v1863
    %1893 = vmatprep.subr.mxu0 %v1860
    %1894 = vmatpush1.msra.mxu0 %v1859
    %1895 = vmatprep.subr.mxu0 %v1856
    %1896 = vmatpush1.msra.mxu0 %v1855
    %1897 = vmatprep.subr.mxu0 %v1852
    %1898 = vmatpush1.msra.mxu0 %v1851
    %1899 = vmatprep.subr.mxu0 %v1848
    %1900 = vmatpush1.msra.mxu0 %v1847
    %1901 = vmatprep.subr.mxu0 %v1844
    %1902 = vmatpush1.msra.mxu0 %v1843
    %1903 = vmatprep.subr.mxu0 %v1840
    %1904 = vmatpush1.msra.mxu0 %v1839
    %1905 = vmatprep.subr.mxu0 %v1836
    %1906 = vmatpush1.msra.mxu0 %v1835
    %1907 = vmatprep.subr.mxu0 %v1832
    %1908 = vmatpush1.msra.mxu0 %v1831
    %1909 = vmatprep.subr.mxu0 %v1828
    %1910 = vmatpush1.msra.mxu0 %v1827
    %1911 = vmatprep.subr.mxu0 %v1824
    %1912 = vmatpush1.msra.mxu0 %v1823
    %1913 = vmatprep.subr.mxu0 %v1820
    %1914 = vmatpush1.msra.mxu0 %v1819
    %1915 = vmatprep.subr.mxu0 0.0
    %1916 = vmatpush2.msra.mxu0 0.0
    %1917 = vmatprep.subr.mxu0 0.0
    %1918 = vmatpush2.msra.mxu0 0.0
    %1919 = vmatprep.subr.mxu0 0.0
    %1920 = vmatpush2.msra.mxu0 0.0
    %1921 = vmatprep.subr.mxu0 0.0
    %1922 = vmatpush2.msra.mxu0 0.0
    %1923 = vmatprep.subr.mxu0 0.0
    %1924 = vmatpush2.msra.mxu0 0.0
    %1925 = vmatprep.subr.mxu0 0.0
    %1926 = vmatpush2.msra.mxu0 0.0
    %1927 = vmatprep.subr.mxu0 0.0
    %1928 = vmatpush2.msra.mxu0 0.0
    %1929 = vmatprep.subr.mxu0 0.0
    %1930 = vmatpush2.msra.mxu0 0.0
    %1931 = vmatprep.subr.mxu0 0.0
    %1932 = vmatpush2.msra.mxu0 0.0
    %1933 = vmatprep.subr.mxu0 0.0
    %1934 = vmatpush2.msra.mxu0 0.0
    %1935 = vmatprep.subr.mxu0 0.0
    %1936 = vmatpush2.msra.mxu0 0.0
    %1937 = vmatprep.subr.mxu0 0.0
    %1938 = vmatpush2.msra.mxu0 0.0
    %1939 = vmatprep.subr.mxu0 0.0
    %1940 = vmatpush2.msra.mxu0 0.0
    %1941 = vmatprep.subr.mxu0 0.0
    %1942 = vmatpush2.msra.mxu0 0.0
    %1943 = vmatprep.subr.mxu0 0.0
    %1944 = vmatpush2.msra.mxu0 0.0
    %1945 = vmatprep.subr.mxu0 0.0
    %1946 = vmatpush2.msra.mxu0 0.0
    %1947 = vmatprep.mubr.f32.mxu0 0.0
    %1948 = vmatmul.mubr.f32.gmra.mxu0 %v1809
    %v1949 = vpop.f32.mrf.mxu0
    %v1950 = vadd.f32 0.0, %v1949
    %v1951 = vpop.f32.mrf.mxu0
    %v1952 = vadd.f32 0.0, %v1951
    %1953 = vdwg.mxu0
    %1954 = vmatprep.subr.mxu0 %v1882
    %1955 = vmatpush1.msra.mxu0 %v1881
    %1956 = vmatprep.subr.mxu0 %v1878
    %1957 = vmatpush1.msra.mxu0 %v1877
    %1958 = vmatprep.subr.mxu0 %v1874
    %1959 = vmatpush1.msra.mxu0 %v1873
    %1960 = vmatprep.subr.mxu0 %v1870
    %1961 = vmatpush1.msra.mxu0 %v1869
    %1962 = vmatprep.subr.mxu0 %v1866
    %1963 = vmatpush1.msra.mxu0 %v1865
    %1964 = vmatprep.subr.mxu0 %v1862
    %1965 = vmatpush1.msra.mxu0 %v1861
    %1966 = vmatprep.subr.mxu0 %v1858
    %1967 = vmatpush1.msra.mxu0 %v1857
    %1968 = vmatprep.subr.mxu0 %v1854
    %1969 = vmatpush1.msra.mxu0 %v1853
    %1970 = vmatprep.subr.mxu0 %v1850
    %1971 = vmatpush1.msra.mxu0 %v1849
    %1972 = vmatprep.subr.mxu0 %v1846
    %1973 = vmatpush1.msra.mxu0 %v1845
    %1974 = vmatprep.subr.mxu0 %v1842
    %1975 = vmatpush1.msra.mxu0 %v1841
    %1976 = vmatprep.subr.mxu0 %v1838
    %1977 = vmatpush1.msra.mxu0 %v1837
    %1978 = vmatprep.subr.mxu0 %v1834
    %1979 = vmatpush1.msra.mxu0 %v1833
    %1980 = vmatprep.subr.mxu0 %v1830
    %1981 = vmatpush1.msra.mxu0 %v1829
    %1982 = vmatprep.subr.mxu0 %v1826
    %1983 = vmatpush1.msra.mxu0 %v1825
    %1984 = vmatprep.subr.mxu0 %v1822
    %1985 = vmatpush1.msra.mxu0 %v1821
    %1986 = vmatprep.subr.mxu0 0.0
    %1987 = vmatpush2.msra.mxu0 0.0
    %1988 = vmatprep.subr.mxu0 0.0
    %1989 = vmatpush2.msra.mxu0 0.0
    %1990 = vmatprep.subr.mxu0 0.0
    %1991 = vmatpush2.msra.mxu0 0.0
    %1992 = vmatprep.subr.mxu0 0.0
    %1993 = vmatpush2.msra.mxu0 0.0
    %1994 = vmatprep.subr.mxu0 0.0
    %1995 = vmatpush2.msra.mxu0 0.0
    %1996 = vmatprep.subr.mxu0 0.0
    %1997 = vmatpush2.msra.mxu0 0.0
    %1998 = vmatprep.subr.mxu0 0.0
    %1999 = vmatpush2.msra.mxu0 0.0
    %2000 = vmatprep.subr.mxu0 0.0
    %2001 = vmatpush2.msra.mxu0 0.0
    %2002 = vmatprep.subr.mxu0 0.0
    %2003 = vmatpush2.msra.mxu0 0.0
    %2004 = vmatprep.subr.mxu0 0.0
    %2005 = vmatpush2.msra.mxu0 0.0
    %2006 = vmatprep.subr.mxu0 0.0
    %2007 = vmatpush2.msra.mxu0 0.0
    %2008 = vmatprep.subr.mxu0 0.0
    %2009 = vmatpush2.msra.mxu0 0.0
    %2010 = vmatprep.subr.mxu0 0.0
    %2011 = vmatpush2.msra.mxu0 0.0
    %2012 = vmatprep.subr.mxu0 0.0
    %2013 = vmatpush2.msra.mxu0 0.0
    %2014 = vmatprep.subr.mxu0 0.0
    %2015 = vmatpush2.msra.mxu0 0.0
    %2016 = vmatprep.subr.mxu0 0.0
    %2017 = vmatpush2.msra.mxu0 0.0
    %2018 = vmatprep.mubr.f32.mxu0 0.0
    %2019 = vmatmul.mubr.f32.gmra.mxu0 %v1809
    %v2020 = vpop.f32.mrf.mxu0
    %v2021 = vadd.f32 0.0, %v2020
    %v2022 = vpop.f32.mrf.mxu0
    %v2023 = vadd.f32 0.0, %v2022
    %2024 = vdwg.mxu0
    %v2025 = vadd.f32 %v1815, %v1950
    %v2026 = vadd.f32 %v1816, %v1952
    %v2027 = vadd.f32 %v1817, %v2021
    %v2028 = vadd.f32 %v1818, %v2023
    %v2029 = vxor.u32 %v2025, 2147483648
    %v2030 = vmul.f32 %v2029, 1.442695
    %v2031 = vpow.pop %v2030
    %v2032 = vadd.f32 %v2031, 1.0
    %v2033 = vrcp.pop %v2032
    %v2034 = vmul.f32 1.0, %v2033
    %v2035 = vxor.u32 %v2026, 2147483648
    %v2036 = vmul.f32 %v2035, 1.442695
    %v2037 = vpow.pop %v2036
    %v2038 = vadd.f32 %v2037, 1.0
    %v2039 = vrcp.pop %v2038
    %v2040 = vmul.f32 1.0, %v2039
    %v2041 = vtanh.pop %v2027
    %v2042 = vxor.u32 %v2028, 2147483648
    %v2043 = vmul.f32 %v2042, 1.442695
    %v2044 = vpow.pop %v2043
    %v2045 = vadd.f32 %v2044, 1.0
    %v2046 = vrcp.pop %v2045
    %v2047 = vmul.f32 1.0, %v2046
    %v2048 = vmul.f32 %v2040, %v1807
    %v2049 = vmul.f32 %v2034, %v2041
    %v2050 = vadd.f32 %v2048, %v2049
    %v2051 = vtanh.pop %v2050
    %v2052 = vmul.f32 %v2047, %v2051
    %s2053 = scalar_lea.vmem [#allocation8], 48
    %2054 = vst [vmem:[%s2053] sm:$0xff] %v2052
    // Predicated region
    $region26: #{tpu_custom_call.1} parent=1 // pred_check
      _
    $region27: #{tpu_custom_call.1} parent=1 // pred_check_branch
      %2056 = sbr.rel (0) target = $region29
    $region28: #{tpu_custom_call.1} parent=1 // pred_region
      %s2058 = ssub.s32 896, 896
      %2059 = vsyncadd [#allocation5], %s2058
      %s2060 = sshll.u32 [#allocation8], 4
      %s2061 = int_to_ptr.vmem [resolvable:$true] %s2060
      %2066 = dma.vmem_to_hbm [thread:$0]  %s2061, 896, %s4, [#allocation5], 128, 128, 8
    $region29: #{tpu_custom_call.1} parent=1 // pred_fallthru
      _
    // Predicated region
    $region30: #{tpu_custom_call.1} parent=1 // pred_check
      _
    $region31: #{tpu_custom_call.1} parent=1 // pred_check_branch
      %2068 = sbr.rel (0) target = $region33
    $region32: #{tpu_custom_call.1} parent=1 // pred_region
      %2069 = dma.done [#allocation5], 896
    $region33: #{tpu_custom_call.1} parent=1 // pred_fallthru
      _
    %2070 = vsyncpa [#allocation4], 1
    %2071 = vsyncpa [#allocation7], 1
    %2072 = vsyncpa [#allocation5], 1

</llo_original>
